<compile_context>
chip_gen: v7x
topology: tpu7x:2x2x1
jax: 0.10.0
libtpu: 0.0.40
codegen_flags: <defaults>
</compile_context>

<pallas_src>
import functools

import jax
import jax.numpy as jnp
from jax.experimental import pallas as pl
from jax.experimental.pallas import tpu as pltpu


def _round_up(x, m):
    return (x + m - 1) // m * m


def _choose_batch_tiling(B):
    """Pick (num_steps, tile_rows, padded_batch) for the batch grid axis."""
    if B <= 128:
        nb = 1
    elif B <= 512:
        nb = 2                                   # >= 2 steps: both v7x TCs get work
    else:
        target = 512 if B >= 2048 else 256       # fill the 256-row MXU on v6e/v7x
        nb = max(2, pl.cdiv(B, target))
    TB = _round_up(pl.cdiv(B, nb), 8)            # sublane-aligned, bounded waste
    return nb, TB, nb * TB


def decoder_kernel(z_ref, w1_ref, b1_ref, w2_ref, b2_ref, out_ref):
    # hidden = relu(z @ W1 + b1)   (bf16 operands, f32 accumulate on the MXU)
    h = jnp.dot(z_ref[...], w1_ref[...], preferred_element_type=jnp.float32)
    h = jnp.maximum(h + b1_ref[...], 0.0)        # b1: [1, H_pad] broadcast, f32
    # logits = h @ W2 + b2         (h re-cast to bf16 for the MXU, f32 accumulate)
    logits = jnp.dot(h.astype(jnp.bfloat16), w2_ref[...],
                     preferred_element_type=jnp.float32)
    x = logits + b2_ref[...]
    # sigmoid via EUP exp + approx reciprocal (avoids a VPU f32 divide sequence).
    out_ref[...] = pl.reciprocal(1.0 + jnp.exp(-x), approx=True).astype(out_ref.dtype)


def prepare_decoder_params(w1, b1, w2, b2):
    """One-time prep: zero-pad to lane-friendly shapes and cast weights to bf16.

    Weights are stored transposed relative to torch.nn.Linear:
      w1: [z_dim, hidden], w2: [hidden, input_dim]; b1/b2 any shape reshapable
      to [1, dim].  Call once and reuse the result for every forward call.
    """
    z_dim, hidden_dim = w1.shape
    hidden_dim2, out_dim = w2.shape
    assert hidden_dim == hidden_dim2
    K_pad = _round_up(z_dim, 128)                # 20  -> 128 (lane-aligned K)
    H_pad = _round_up(hidden_dim, 128)           # 500 -> 512
    f32, bf16 = jnp.float32, jnp.bfloat16

    w1_p = jnp.zeros((K_pad, H_pad), bf16).at[:z_dim, :hidden_dim].set(w1.astype(bf16))
    b1_p = jnp.zeros((1, H_pad), f32).at[:, :hidden_dim].set(
        b1.reshape(1, -1).astype(f32))
    # Output dim stays 784 (equals full array dim -> valid block; one masked-tail
    # vst column is far cheaper than a post-kernel column-slice copy).
    w2_p = jnp.zeros((H_pad, out_dim), bf16).at[:hidden_dim, :].set(w2.astype(bf16))
    b2_p = b2.reshape(1, -1).astype(f32)
    return (jax.device_put(w1_p), jax.device_put(b1_p),
            jax.device_put(w2_p), jax.device_put(b2_p))


@functools.partial(jax.jit, static_argnames=("out_dtype",))
def decoder_forward(z, w1_p, b1_p, w2_p, b2_p, *, out_dtype=jnp.float32):
    """z: [B, z_dim] f32 -> mean: [B, input_dim] (out_dtype, default f32)."""
    B, z_dim = z.shape
    K_pad, H_pad = w1_p.shape
    out_dim = w2_p.shape[1]

    nb, TB, B_pad = _choose_batch_tiling(B)

    # Per-call activation prep only: pad batch + contraction dim, cast to bf16.
    z_p = jnp.zeros((B_pad, K_pad), jnp.bfloat16).at[:B, :z_dim].set(
        z.astype(jnp.bfloat16))

    cost = pl.CostEstimate(
        flops=2 * B_pad * (K_pad * H_pad + H_pad * out_dim),
        transcendentals=2 * B_pad * out_dim,      # exp + reciprocal
        bytes_accessed=(z_p.size * 2 + w1_p.size * 2 + w2_p.size * 2
                        + b1_p.size * 4 + b2_p.size * 4
                        + B_pad * out_dim * jnp.dtype(out_dtype).itemsize),
    )

    out = pl.pallas_call(
        decoder_kernel,
        out_shape=jax.ShapeDtypeStruct((B_pad, out_dim), out_dtype),
        grid=(nb,),
        in_specs=[
            # batch-tiled activations
            pl.BlockSpec((TB, K_pad), lambda i: (i, 0)),
            # weights / biases: constant block index -> fetched from HBM once,
            # VMEM-resident across every batch grid step.
            pl.BlockSpec((K_pad, H_pad), lambda i: (0, 0)),
            pl.BlockSpec((1, H_pad), lambda i: (0, 0)),
            pl.BlockSpec((H_pad, out_dim), lambda i: (0, 0)),
            pl.BlockSpec((1, out_dim), lambda i: (0, 0)),
        ],
        out_specs=pl.BlockSpec((TB, out_dim), lambda i: (i, 0)),
        compiler_params=pltpu.CompilerParams(
            dimension_semantics=("parallel",),    # shards batch over v7x's 2 TCs
        ),
        cost_estimate=cost,
    )(z_p, w1_p, b1_p, w2_p, b2_p)

    # Only a row slice, and only when the batch actually needed padding.
    return out if B_pad == B else out[:B]


def init_params(key, z_dim=20, hidden_dim=500, input_dim=784):
    """Deterministic init mimicking nn.Linear's U(-1/sqrt(fan_in), 1/sqrt(fan_in))."""
    k1, k2, k3, k4 = jax.random.split(key, 4)
    lim1 = 1.0 / jnp.sqrt(jnp.float32(z_dim))
    lim2 = 1.0 / jnp.sqrt(jnp.float32(hidden_dim))
    w1 = jax.random.uniform(k1, (z_dim, hidden_dim), jnp.float32, -lim1, lim1)
    b1 = jax.random.uniform(k2, (1, hidden_dim), jnp.float32, -lim1, lim1)
    w2 = jax.random.uniform(k3, (hidden_dim, input_dim), jnp.float32, -lim2, lim2)
    b2 = jax.random.uniform(k4, (1, input_dim), jnp.float32, -lim2, lim2)
    return w1, b1, w2, b2


def _reference(z, w1, b1, w2, b2):
    h = jnp.maximum(z @ w1 + b1, 0.0)
    return jax.nn.sigmoid(h @ w2 + b2)


if __name__ == "__main__":
    key = jax.random.PRNGKey(0)
    kp, kz1, kz2 = jax.random.split(key, 3)

    z_dim, hidden_dim, input_dim = 20, 500, 784
    w1, b1, w2, b2 = init_params(kp, z_dim, hidden_dim, input_dim)

    # One-time weight prep (padding + bf16 cast) -- reused by every forward call.
    params = prepare_decoder_params(w1, b1, w2, b2)
    jax.block_until_ready(params)

    # Small batch: single grid step, B_pad == B (no slicing anywhere).
    z_small = jax.random.normal(kz1, (8, z_dim), jnp.float32)
    mean_small = jax.block_until_ready(decoder_forward(z_small, *params))
    assert mean_small.shape == (8, input_dim)
    ref_small = _reference(z_small, w1, b1, w2, b2)
    # bf16 weight/activation streams -> relaxed tolerance vs the f32 reference.
    assert jnp.allclose(mean_small, ref_small, atol=2e-2, rtol=2e-2)

    # Larger batch: 2 grid steps (TB=128), exercises the parallel batch axis.
    z_big = jax.random.normal(kz2, (256, z_dim), jnp.float32)
    mean_big = jax.block_until_ready(decoder_forward(z_big, *params))
    assert mean_big.shape == (256, input_dim)
    ref_big = _reference(z_big, w1, b1, w2, b2)
    assert jnp.allclose(mean_big, ref_big, atol=2e-2, rtol=2e-2)

    print("KERNEL_OK")
</pallas_src>

<mosaic_0001>
module attributes {stable_mosaic.version = 11 : i64} {
  func.func @decoder_kernel(%arg0: i32, %arg1: memref<8x128xbf16, #tpu.memory_space<vmem>>, %arg2: memref<128x512xbf16, #tpu.memory_space<vmem>>, %arg3: memref<1x512xf32, #tpu.memory_space<vmem>>, %arg4: memref<512x784xbf16, #tpu.memory_space<vmem>>, %arg5: memref<1x784xf32, #tpu.memory_space<vmem>>, %arg6: memref<8x784xf32, #tpu.memory_space<vmem>>) attributes {dimension_semantics = [#tpu.dimension_semantics<parallel>], iteration_bounds = array<i64: 1>, scalar_prefetch = 0 : i64, scratch_operands = 0 : i64, tpu.core_type = #tpu.core_type<tc>, window_params = [{transform_indices = @transform_0, window_bounds = array<i64: 8, 128>}, {pipeline_mode = #tpu.pipeline_mode<synchronous>, transform_indices = @transform_1, window_bounds = array<i64: 128, 512>}, {pipeline_mode = #tpu.pipeline_mode<synchronous>, transform_indices = @transform_2, window_bounds = array<i64: 1, 512>}, {pipeline_mode = #tpu.pipeline_mode<synchronous>, transform_indices = @transform_3, window_bounds = array<i64: 512, 784>}, {pipeline_mode = #tpu.pipeline_mode<synchronous>, transform_indices = @transform_4, window_bounds = array<i64: 1, 784>}, {transform_indices = @transform_5, window_bounds = array<i64: 8, 784>}]} {
    %c0 = arith.constant 0 : index
    %c0_0 = arith.constant 0 : index
    %0 = vector.load %arg1[%c0, %c0_0] : memref<8x128xbf16, #tpu.memory_space<vmem>>, vector<8x128xbf16>
    %c0_1 = arith.constant 0 : index
    %c0_2 = arith.constant 0 : index
    %1 = vector.load %arg2[%c0_1, %c0_2] : memref<128x512xbf16, #tpu.memory_space<vmem>>, vector<128x512xbf16>
    %cst = arith.constant dense<0.000000e+00> : vector<8x512xf32>
    %2 = tpu.matmul %0, %1, %cst {dimension_numbers = #tpu.dot_dimension_numbers<[1], [0], [0], [1], [0, 0, 1, 1], [], []>} : vector<8x128xbf16>, vector<128x512xbf16>, vector<8x512xf32> -> vector<8x512xf32>
    %c0_3 = arith.constant 0 : index
    %c0_4 = arith.constant 0 : index
    %3 = vector.load %arg3[%c0_3, %c0_4] : memref<1x512xf32, #tpu.memory_space<vmem>>, vector<1x512xf32>
    %4 = vector.broadcast %3 : vector<1x512xf32> to vector<8x512xf32>
    %5 = arith.addf %2, %4 : vector<8x512xf32>
    %cst_5 = arith.constant 0.000000e+00 : f32
    %6 = vector.broadcast %cst_5 : f32 to vector<8x512xf32>
    %7 = arith.maximumf %5, %6 : vector<8x512xf32>
    %8 = arith.truncf %7 : vector<8x512xf32> to vector<8x512xbf16>
    %c0_6 = arith.constant 0 : index
    %c0_7 = arith.constant 0 : index
    %9 = vector.load %arg4[%c0_6, %c0_7] : memref<512x784xbf16, #tpu.memory_space<vmem>>, vector<512x784xbf16>
    %cst_8 = arith.constant dense<0.000000e+00> : vector<8x784xf32>
    %10 = tpu.matmul %8, %9, %cst_8 {dimension_numbers = #tpu.dot_dimension_numbers<[1], [0], [0], [1], [0, 0, 1, 1], [], []>} : vector<8x512xbf16>, vector<512x784xbf16>, vector<8x784xf32> -> vector<8x784xf32>
    %c0_9 = arith.constant 0 : index
    %c0_10 = arith.constant 0 : index
    %11 = vector.load %arg5[%c0_9, %c0_10] : memref<1x784xf32, #tpu.memory_space<vmem>>, vector<1x784xf32>
    %12 = vector.broadcast %11 : vector<1x784xf32> to vector<8x784xf32>
    %13 = arith.addf %10, %12 : vector<8x784xf32>
    %cst_11 = arith.constant 0.000000e+00 : f32
    %14 = vector.broadcast %cst_11 : f32 to vector<8x784xf32>
    %15 = arith.subf %14, %13 : vector<8x784xf32>
    %16 = math.exp %15 : vector<8x784xf32>
    %cst_12 = arith.constant 1.000000e+00 : f32
    %17 = vector.broadcast %cst_12 : f32 to vector<8x784xf32>
    %18 = arith.addf %17, %16 : vector<8x784xf32>
    %19 = tpu.reciprocal %18 {approx = true} : vector<8x784xf32> -> vector<8x784xf32>
    %c0_13 = arith.constant 0 : index
    %c0_14 = arith.constant 0 : index
    %20 = vector.load %arg6[%c0_13, %c0_14] : memref<8x784xf32, #tpu.memory_space<vmem>>, vector<8x784xf32>
    tpu.vector_store %arg6[%c0_13, %c0_14], %19 {strides = array<i32>} : memref<8x784xf32, #tpu.memory_space<vmem>>, vector<8x784xf32>,
    return
  }
  func.func @transform_0(%arg0: i32) -> (i32, i32) {
    %c0_i32 = arith.constant 0 : i32
    %c0_i32_0 = arith.constant 0 : i32
    return %arg0, %c0_i32 : i32, i32
  }
  func.func @transform_1(%arg0: i32) -> (i32, i32) {
    %c0_i32 = arith.constant 0 : i32
    %c0_i32_0 = arith.constant 0 : i32
    %c0_i32_1 = arith.constant 0 : i32
    return %c0_i32, %c0_i32_0 : i32, i32
  }
  func.func @transform_2(%arg0: i32) -> (i32, i32) {
    %c0_i32 = arith.constant 0 : i32
    %c0_i32_0 = arith.constant 0 : i32
    %c0_i32_1 = arith.constant 0 : i32
    return %c0_i32, %c0_i32_0 : i32, i32
  }
  func.func @transform_3(%arg0: i32) -> (i32, i32) {
    %c0_i32 = arith.constant 0 : i32
    %c0_i32_0 = arith.constant 0 : i32
    %c0_i32_1 = arith.constant 0 : i32
    return %c0_i32, %c0_i32_0 : i32, i32
  }
  func.func @transform_4(%arg0: i32) -> (i32, i32) {
    %c0_i32 = arith.constant 0 : i32
    %c0_i32_0 = arith.constant 0 : i32
    %c0_i32_1 = arith.constant 0 : i32
    return %c0_i32, %c0_i32_0 : i32, i32
  }
  func.func @transform_5(%arg0: i32) -> (i32, i32) {
    %c0_i32 = arith.constant 0 : i32
    %c0_i32_0 = arith.constant 0 : i32
    return %arg0, %c0_i32 : i32, i32
  }
}

</mosaic_0001>

<llo_original>
// kernel: decoder_forward.1
$region0: #{decoder_forward.1}
  #allocation0 [shape = 'u32[]', space=smem, size = 0x4, offset = 0x4, fixed_abs, tag = 'smem constant byte address 0x4 - core index']
  #allocation1 [shape = 'u32[144,128]{1,0:T(1,128)}', space=vmem, size = 0x12000, scoped, tag = 'internal scratch']
  %s0 = inlined_call_operand.vmem [shape: bf16[8,128], index: 0, kind: input, shape index: {}]
  %s1 = inlined_call_operand.vmem [shape: bf16[128,512], index: 1, kind: input, shape index: {}]
  %s2 = inlined_call_operand.vmem [shape: f32[1,512], index: 2, kind: input, shape index: {}]
  %s3 = inlined_call_operand.vmem [shape: bf16[512,784], index: 3, kind: input, shape index: {}]
  %s4 = inlined_call_operand.vmem [shape: f32[1,784], index: 4, kind: input, shape index: {}]
  %s5 = inlined_call_operand.hbm [shape: f32[8,784], index: 5, kind: output, shape index: {}]
  %s6 = sld [smem:[#allocation0]]
  $region30: #{decoder_forward.1} parent=0
    _
  %s8 = ssub.s32 1, %s6
  %s9 = scalar_select 0, %s8, %s6
  $region1: #{decoder_forward.1} parent=0
    #allocation2 [shape = 'u8[28672]{0}', space=vmem, size = 0x7000, scoped, tag = 'output window, operand 0, single buffered']
    #allocation3 [shape = 's32[1]{0}', space=sflag, size = 0x4, scoped, tag = 'scoped memory for decoder_forward.1']
    %10 = vsyncpa [#allocation3], 0
    // Predicated region
    $region2: #{decoder_forward.1} parent=1 // pred_check
      _
    $region3: #{decoder_forward.1} parent=1 // pred_check_branch
      %12 = sbr.rel (0) target = $region5
    $region4: #{decoder_forward.1} parent=1 // pred_region
      _
    $region5: #{decoder_forward.1} parent=1 // pred_fallthru
      _
    // Predicated region
    $region6: #{decoder_forward.1} parent=1 // pred_check
      _
    $region7: #{decoder_forward.1} parent=1 // pred_check_branch
      %14 = sbr.rel (0) target = $region9
    $region8: #{decoder_forward.1} parent=1 // pred_region
      _
    $region9: #{decoder_forward.1} parent=1 // pred_fallthru
      _
    // Predicated region
    $region10: #{decoder_forward.1} parent=1 // pred_check
      _
    $region11: #{decoder_forward.1} parent=1 // pred_check_branch
      %16 = sbr.rel (0) target = $region13
    $region12: #{decoder_forward.1} parent=1 // pred_region
      _
    $region13: #{decoder_forward.1} parent=1 // pred_fallthru
      _
    // Predicated region
    $region14: #{decoder_forward.1} parent=1 // pred_check
      _
    $region15: #{decoder_forward.1} parent=1 // pred_check_branch
      %18 = sbr.rel (0) target = $region17
    $region16: #{decoder_forward.1} parent=1 // pred_region
      _
    $region17: #{decoder_forward.1} parent=1 // pred_fallthru
      _
    // Predicated region
    $region18: #{decoder_forward.1} parent=1 // pred_check
      _
    $region19: #{decoder_forward.1} parent=1 // pred_check_branch
      %20 = sbr.rel (0) target = $region21
    $region20: #{decoder_forward.1} parent=1 // pred_region
      _
    $region21: #{decoder_forward.1} parent=1 // pred_fallthru
      _
    %v22 = vld [vmem:[%s0] sm:$0xf]
    %v23 = vld [vmem:[%s1] sm:$0xff]
    %v24 = vld [vmem:[%s1 + $0x8] sm:$0xff]
    %v25 = vld [vmem:[%s1 + $0x10] sm:$0xff]
    %v26 = vld [vmem:[%s1 + $0x18] sm:$0xff]
    %v27 = vld [vmem:[%s1 + $0x20] sm:$0xff]
    %v28 = vld [vmem:[%s1 + $0x28] sm:$0xff]
    %v29 = vld [vmem:[%s1 + $0x30] sm:$0xff]
    %v30 = vld [vmem:[%s1 + $0x38] sm:$0xff]
    %v31 = vld [vmem:[%s1 + $0x40] sm:$0xff]
    %v32 = vld [vmem:[%s1 + $0x48] sm:$0xff]
    %v33 = vld [vmem:[%s1 + $0x50] sm:$0xff]
    %v34 = vld [vmem:[%s1 + $0x58] sm:$0xff]
    %v35 = vld [vmem:[%s1 + $0x60] sm:$0xff]
    %v36 = vld [vmem:[%s1 + $0x68] sm:$0xff]
    %v37 = vld [vmem:[%s1 + $0x70] sm:$0xff]
    %v38 = vld [vmem:[%s1 + $0x78] sm:$0xff]
    %v39 = vld [vmem:[%s1 + $0x80] sm:$0xff]
    %v40 = vld [vmem:[%s1 + $0x88] sm:$0xff]
    %v41 = vld [vmem:[%s1 + $0x90] sm:$0xff]
    %v42 = vld [vmem:[%s1 + $0x98] sm:$0xff]
    %v43 = vld [vmem:[%s1 + $0xa0] sm:$0xff]
    %v44 = vld [vmem:[%s1 + $0xa8] sm:$0xff]
    %v45 = vld [vmem:[%s1 + $0xb0] sm:$0xff]
    %v46 = vld [vmem:[%s1 + $0xb8] sm:$0xff]
    %v47 = vld [vmem:[%s1 + $0xc0] sm:$0xff]
    %v48 = vld [vmem:[%s1 + $0xc8] sm:$0xff]
    %v49 = vld [vmem:[%s1 + $0xd0] sm:$0xff]
    %v50 = vld [vmem:[%s1 + $0xd8] sm:$0xff]
    %v51 = vld [vmem:[%s1 + $0xe0] sm:$0xff]
    %v52 = vld [vmem:[%s1 + $0xe8] sm:$0xff]
    %v53 = vld [vmem:[%s1 + $0xf0] sm:$0xff]
    %v54 = vld [vmem:[%s1 + $0xf8] sm:$0xff]
    %v55 = vld [vmem:[%s2] sm:$0xf]
    %v57 = vlaneseq
    %v58 = vshrl.u32 %v57, 7
    %v59 = vsub.s32 0, %v58
    %v60 = vrot.slane %v55, %v59
    %v61 = vlaneseq
    %v62 = vshrl.u32 %v61, 7
    %v63 = vsub.s32 1, %v62
    %v64 = vrot.slane %v55, %v63
    %v65 = vlaneseq
    %v66 = vshrl.u32 %v65, 7
    %v67 = vsub.s32 2, %v66
    %v68 = vrot.slane %v55, %v67
    %v69 = vlaneseq
    %v70 = vshrl.u32 %v69, 7
    %v71 = vsub.s32 3, %v70
    %v72 = vrot.slane %v55, %v71
    %v109 = vunpack.c.l.b16 %v23
    %v110 = vunpack.c.h.b16 %v23
    %v111 = vunpack.c.l.b16 %v24
    %v112 = vunpack.c.h.b16 %v24
    %v113 = vunpack.c.l.b16 %v25
    %v114 = vunpack.c.h.b16 %v25
    %v115 = vunpack.c.l.b16 %v26
    %v116 = vunpack.c.h.b16 %v26
    %v117 = vunpack.c.l.b16 %v27
    %v118 = vunpack.c.h.b16 %v27
    %v119 = vunpack.c.l.b16 %v28
    %v120 = vunpack.c.h.b16 %v28
    %v121 = vunpack.c.l.b16 %v29
    %v122 = vunpack.c.h.b16 %v29
    %v123 = vunpack.c.l.b16 %v30
    %v124 = vunpack.c.h.b16 %v30
    %v125 = vunpack.c.l.b16 %v31
    %v126 = vunpack.c.h.b16 %v31
    %v127 = vunpack.c.l.b16 %v32
    %v128 = vunpack.c.h.b16 %v32
    %v129 = vunpack.c.l.b16 %v33
    %v130 = vunpack.c.h.b16 %v33
    %v131 = vunpack.c.l.b16 %v34
    %v132 = vunpack.c.h.b16 %v34
    %v133 = vunpack.c.l.b16 %v35
    %v134 = vunpack.c.h.b16 %v35
    %v135 = vunpack.c.l.b16 %v36
    %v136 = vunpack.c.h.b16 %v36
    %v137 = vunpack.c.l.b16 %v37
    %v138 = vunpack.c.h.b16 %v37
    %v139 = vunpack.c.l.b16 %v38
    %v140 = vunpack.c.h.b16 %v38
    %v141 = vunpack.c.l.b16 %v39
    %v142 = vunpack.c.h.b16 %v39
    %v143 = vunpack.c.l.b16 %v40
    %v144 = vunpack.c.h.b16 %v40
    %v145 = vunpack.c.l.b16 %v41
    %v146 = vunpack.c.h.b16 %v41
    %v147 = vunpack.c.l.b16 %v42
    %v148 = vunpack.c.h.b16 %v42
    %v149 = vunpack.c.l.b16 %v43
    %v150 = vunpack.c.h.b16 %v43
    %v151 = vunpack.c.l.b16 %v44
    %v152 = vunpack.c.h.b16 %v44
    %v153 = vunpack.c.l.b16 %v45
    %v154 = vunpack.c.h.b16 %v45
    %v155 = vunpack.c.l.b16 %v46
    %v156 = vunpack.c.h.b16 %v46
    %v157 = vunpack.c.l.b16 %v47
    %v158 = vunpack.c.h.b16 %v47
    %v159 = vunpack.c.l.b16 %v48
    %v160 = vunpack.c.h.b16 %v48
    %v161 = vunpack.c.l.b16 %v49
    %v162 = vunpack.c.h.b16 %v49
    %v163 = vunpack.c.l.b16 %v50
    %v164 = vunpack.c.h.b16 %v50
    %v165 = vunpack.c.l.b16 %v51
    %v166 = vunpack.c.h.b16 %v51
    %v167 = vunpack.c.l.b16 %v52
    %v168 = vunpack.c.h.b16 %v52
    %v169 = vunpack.c.l.b16 %v53
    %v170 = vunpack.c.h.b16 %v53
    %v171 = vunpack.c.l.b16 %v54
    %v172 = vunpack.c.h.b16 %v54
    %v173 = vpack.c.b16 %v113, %v109
    %v174 = vpack.c.b16 %v114, %v110
    %v175 = vpack.c.b16 %v115, %v111
    %v176 = vpack.c.b16 %v116, %v112
    %v177 = vpack.c.b16 %v121, %v117
    %v178 = vpack.c.b16 %v122, %v118
    %v179 = vpack.c.b16 %v123, %v119
    %v180 = vpack.c.b16 %v124, %v120
    %v181 = vpack.c.b16 %v129, %v125
    %v182 = vpack.c.b16 %v130, %v126
    %v183 = vpack.c.b16 %v131, %v127
    %v184 = vpack.c.b16 %v132, %v128
    %v185 = vpack.c.b16 %v137, %v133
    %v186 = vpack.c.b16 %v138, %v134
    %v187 = vpack.c.b16 %v139, %v135
    %v188 = vpack.c.b16 %v140, %v136
    %v189 = vpack.c.b16 %v145, %v141
    %v190 = vpack.c.b16 %v146, %v142
    %v191 = vpack.c.b16 %v147, %v143
    %v192 = vpack.c.b16 %v148, %v144
    %v193 = vpack.c.b16 %v153, %v149
    %v194 = vpack.c.b16 %v154, %v150
    %v195 = vpack.c.b16 %v155, %v151
    %v196 = vpack.c.b16 %v156, %v152
    %v197 = vpack.c.b16 %v161, %v157
    %v198 = vpack.c.b16 %v162, %v158
    %v199 = vpack.c.b16 %v163, %v159
    %v200 = vpack.c.b16 %v164, %v160
    %v201 = vpack.c.b16 %v169, %v165
    %v202 = vpack.c.b16 %v170, %v166
    %v203 = vpack.c.b16 %v171, %v167
    %v204 = vpack.c.b16 %v172, %v168
    %237 = vmatprep.subr.bf16.mxu0 %v174
    %238 = vmatpush1.bf16.msra.mxu0 %v173
    %239 = vmatprep.subr.bf16.mxu0 %v178
    %240 = vmatpush1.bf16.msra.mxu0 %v177
    %241 = vmatprep.subr.bf16.mxu0 %v182
    %242 = vmatpush1.bf16.msra.mxu0 %v181
    %243 = vmatprep.subr.bf16.mxu0 %v186
    %244 = vmatpush1.bf16.msra.mxu0 %v185
    %245 = vmatprep.subr.bf16.mxu0 %v190
    %246 = vmatpush1.bf16.msra.mxu0 %v189
    %247 = vmatprep.subr.bf16.mxu0 %v194
    %248 = vmatpush1.bf16.msra.mxu0 %v193
    %249 = vmatprep.subr.bf16.mxu0 %v198
    %250 = vmatpush1.bf16.msra.mxu0 %v197
    %251 = vmatprep.subr.bf16.mxu0 %v202
    %252 = vmatpush1.bf16.msra.mxu0 %v201
    %253 = vmatprep.subr.bf16.mxu0 0
    %254 = vmatpush1.bf16.msra.mxu0 0
    %255 = vmatprep.subr.bf16.mxu0 0
    %256 = vmatpush1.bf16.msra.mxu0 0
    %257 = vmatprep.subr.bf16.mxu0 0
    %258 = vmatpush1.bf16.msra.mxu0 0
    %259 = vmatprep.subr.bf16.mxu0 0
    %260 = vmatpush1.bf16.msra.mxu0 0
    %261 = vmatprep.subr.bf16.mxu0 0
    %262 = vmatpush1.bf16.msra.mxu0 0
    %263 = vmatprep.subr.bf16.mxu0 0
    %264 = vmatpush1.bf16.msra.mxu0 0
    %265 = vmatprep.subr.bf16.mxu0 0
    %266 = vmatpush1.bf16.msra.mxu0 0
    %267 = vmatprep.subr.bf16.mxu0 0
    %268 = vmatpush1.bf16.msra.mxu0 0
    %269 = vmatprep.mubr.bf16.mxu0 0
    %270 = vmatmul.mubr.bf16.gmra.mrb[0].mxu0 %v22
    %v271 = vpop.f32.mrb[0].mxu0
    %v272 = vadd.f32 %v60, %v271
    %v273 = vpop.f32.mrb[0].mxu0
    %v274 = vadd.f32 %v64, %v273
    %v275 = vpop.f32.mrb[0].mxu0
    %v276 = vpop.f32.mrb[0].mxu0
    %277 = vdwg.mxu0
    %278 = vmatprep.subr.bf16.mxu0 %v176
    %279 = vmatpush1.bf16.msra.mxu0 %v175
    %280 = vmatprep.subr.bf16.mxu0 %v180
    %281 = vmatpush1.bf16.msra.mxu0 %v179
    %282 = vmatprep.subr.bf16.mxu0 %v184
    %283 = vmatpush1.bf16.msra.mxu0 %v183
    %284 = vmatprep.subr.bf16.mxu0 %v188
    %285 = vmatpush1.bf16.msra.mxu0 %v187
    %286 = vmatprep.subr.bf16.mxu0 %v192
    %287 = vmatpush1.bf16.msra.mxu0 %v191
    %288 = vmatprep.subr.bf16.mxu0 %v196
    %289 = vmatpush1.bf16.msra.mxu0 %v195
    %290 = vmatprep.subr.bf16.mxu0 %v200
    %291 = vmatpush1.bf16.msra.mxu0 %v199
    %292 = vmatprep.subr.bf16.mxu0 %v204
    %293 = vmatpush1.bf16.msra.mxu0 %v203
    %294 = vmatprep.subr.bf16.mxu0 0
    %295 = vmatpush1.bf16.msra.mxu0 0
    %296 = vmatprep.subr.bf16.mxu0 0
    %297 = vmatpush1.bf16.msra.mxu0 0
    %298 = vmatprep.subr.bf16.mxu0 0
    %299 = vmatpush1.bf16.msra.mxu0 0
    %300 = vmatprep.subr.bf16.mxu0 0
    %301 = vmatpush1.bf16.msra.mxu0 0
    %302 = vmatprep.subr.bf16.mxu0 0
    %303 = vmatpush1.bf16.msra.mxu0 0
    %304 = vmatprep.subr.bf16.mxu0 0
    %305 = vmatpush1.bf16.msra.mxu0 0
    %306 = vmatprep.subr.bf16.mxu0 0
    %307 = vmatpush1.bf16.msra.mxu0 0
    %308 = vmatprep.subr.bf16.mxu0 0
    %309 = vmatpush1.bf16.msra.mxu0 0
    %310 = vmatprep.mubr.bf16.mxu0 0
    %311 = vmatmul.mubr.bf16.gmra.mrb[0].mxu0 %v22
    %v312 = vpop.f32.mrb[0].mxu0
    %v313 = vadd.f32 %v68, %v312
    %v314 = vpop.f32.mrb[0].mxu0
    %v315 = vadd.f32 %v72, %v314
    %v316 = vpop.f32.mrb[0].mxu0
    %v317 = vpop.f32.mrb[0].mxu0
    %318 = vdwg.mxu0
    %v319 = vmax.f32 %v272, 0.0
    %v320 = vmax.f32 %v274, 0.0
    %v321 = vmax.f32 %v313, 0.0
    %v322 = vmax.f32 %v315, 0.0
    %v323 = vpack.c.bf16 %v319, %v319
    %v324 = vpack.c.bf16 %v320, %v320
    %v325 = vpack.c.bf16 %v321, %v321
    %v326 = vpack.c.bf16 %v322, %v322
    %v327 = vld [vmem:[%s3] sm:$0xff]
    %v328 = vld [vmem:[%s3 + $0x8] sm:$0xff]
    %v329 = vld [vmem:[%s3 + $0x10] sm:$0xff]
    %v330 = vld [vmem:[%s3 + $0x18] sm:$0xf]
    %v331 = vld [vmem:[%s3 + $0x1c] sm:$0xff]
    %v332 = vld [vmem:[%s3 + $0x24] sm:$0xff]
    %v333 = vld [vmem:[%s3 + $0x2c] sm:$0xff]
    %v334 = vld [vmem:[%s3 + $0x34] sm:$0xf]
    %v335 = vld [vmem:[%s3 + $0x38] sm:$0xff]
    %v336 = vld [vmem:[%s3 + $0x40] sm:$0xff]
    %v337 = vld [vmem:[%s3 + $0x48] sm:$0xff]
    %v338 = vld [vmem:[%s3 + $0x50] sm:$0xf]
    %v339 = vld [vmem:[%s3 + $0x54] sm:$0xff]
    %v340 = vld [vmem:[%s3 + $0x5c] sm:$0xff]
    %v341 = vld [vmem:[%s3 + $0x64] sm:$0xff]
    %v342 = vld [vmem:[%s3 + $0x6c] sm:$0xf]
    %v343 = vld [vmem:[%s3 + $0x70] sm:$0xff]
    %v344 = vld [vmem:[%s3 + $0x78] sm:$0xff]
    %v345 = vld [vmem:[%s3 + $0x80] sm:$0xff]
    %v346 = vld [vmem:[%s3 + $0x88] sm:$0xf]
    %v347 = vld [vmem:[%s3 + $0x8c] sm:$0xff]
    %v348 = vld [vmem:[%s3 + $0x94] sm:$0xff]
    %v349 = vld [vmem:[%s3 + $0x9c] sm:$0xff]
    %v350 = vld [vmem:[%s3 + $0xa4] sm:$0xf]
    %v351 = vld [vmem:[%s3 + $0xa8] sm:$0xff]
    %v352 = vld [vmem:[%s3 + $0xb0] sm:$0xff]
    %v353 = vld [vmem:[%s3 + $0xb8] sm:$0xff]
    %v354 = vld [vmem:[%s3 + $0xc0] sm:$0xf]
    %v355 = vld [vmem:[%s3 + $0xc4] sm:$0xff]
    %v356 = vld [vmem:[%s3 + $0xcc] sm:$0xff]
    %v357 = vld [vmem:[%s3 + $0xd4] sm:$0xff]
    %v358 = vld [vmem:[%s3 + $0xdc] sm:$0xf]
    %v359 = vld [vmem:[%s3 + $0xe0] sm:$0xff]
    %v360 = vld [vmem:[%s3 + $0xe8] sm:$0xff]
    %v361 = vld [vmem:[%s3 + $0xf0] sm:$0xff]
    %v362 = vld [vmem:[%s3 + $0xf8] sm:$0xf]
    %v363 = vld [vmem:[%s3 + $0xfc] sm:$0xff]
    %v364 = vld [vmem:[%s3 + $0x104] sm:$0xff]
    %v365 = vld [vmem:[%s3 + $0x10c] sm:$0xff]
    %v366 = vld [vmem:[%s3 + $0x114] sm:$0xf]
    %v367 = vld [vmem:[%s3 + $0x118] sm:$0xff]
    %v368 = vld [vmem:[%s3 + $0x120] sm:$0xff]
    %v369 = vld [vmem:[%s3 + $0x128] sm:$0xff]
    %v370 = vld [vmem:[%s3 + $0x130] sm:$0xf]
    %v371 = vld [vmem:[%s3 + $0x134] sm:$0xff]
    %v372 = vld [vmem:[%s3 + $0x13c] sm:$0xff]
    %v373 = vld [vmem:[%s3 + $0x144] sm:$0xff]
    %v374 = vld [vmem:[%s3 + $0x14c] sm:$0xf]
    %v375 = vld [vmem:[%s3 + $0x150] sm:$0xff]
    %v376 = vld [vmem:[%s3 + $0x158] sm:$0xff]
    %v377 = vld [vmem:[%s3 + $0x160] sm:$0xff]
    %v378 = vld [vmem:[%s3 + $0x168] sm:$0xf]
    %v379 = vld [vmem:[%s3 + $0x16c] sm:$0xff]
    %v380 = vld [vmem:[%s3 + $0x174] sm:$0xff]
    %v381 = vld [vmem:[%s3 + $0x17c] sm:$0xff]
    %v382 = vld [vmem:[%s3 + $0x184] sm:$0xf]
    %v383 = vld [vmem:[%s3 + $0x188] sm:$0xff]
    %v384 = vld [vmem:[%s3 + $0x190] sm:$0xff]
    %v385 = vld [vmem:[%s3 + $0x198] sm:$0xff]
    %v386 = vld [vmem:[%s3 + $0x1a0] sm:$0xf]
    %v387 = vld [vmem:[%s3 + $0x1a4] sm:$0xff]
    %v388 = vld [vmem:[%s3 + $0x1ac] sm:$0xff]
    %v389 = vld [vmem:[%s3 + $0x1b4] sm:$0xff]
    %v390 = vld [vmem:[%s3 + $0x1bc] sm:$0xf]
    %v391 = vld [vmem:[%s3 + $0x1c0] sm:$0xff]
    %v392 = vld [vmem:[%s3 + $0x1c8] sm:$0xff]
    %v393 = vld [vmem:[%s3 + $0x1d0] sm:$0xff]
    %v394 = vld [vmem:[%s3 + $0x1d8] sm:$0xf]
    %v395 = vld [vmem:[%s3 + $0x1dc] sm:$0xff]
    %v396 = vld [vmem:[%s3 + $0x1e4] sm:$0xff]
    %v397 = vld [vmem:[%s3 + $0x1ec] sm:$0xff]
    %v398 = vld [vmem:[%s3 + $0x1f4] sm:$0xf]
    %v399 = vld [vmem:[%s3 + $0x1f8] sm:$0xff]
    %v400 = vld [vmem:[%s3 + $0x200] sm:$0xff]
    %v401 = vld [vmem:[%s3 + $0x208] sm:$0xff]
    %v402 = vld [vmem:[%s3 + $0x210] sm:$0xf]
    %v403 = vld [vmem:[%s3 + $0x214] sm:$0xff]
    %v404 = vld [vmem:[%s3 + $0x21c] sm:$0xff]
    %v405 = vld [vmem:[%s3 + $0x224] sm:$0xff]
    %v406 = vld [vmem:[%s3 + $0x22c] sm:$0xf]
    %v407 = vld [vmem:[%s3 + $0x230] sm:$0xff]
    %v408 = vld [vmem:[%s3 + $0x238] sm:$0xff]
    %v409 = vld [vmem:[%s3 + $0x240] sm:$0xff]
    %v410 = vld [vmem:[%s3 + $0x248] sm:$0xf]
    %v411 = vld [vmem:[%s3 + $0x24c] sm:$0xff]
    %v412 = vld [vmem:[%s3 + $0x254] sm:$0xff]
    %v413 = vld [vmem:[%s3 + $0x25c] sm:$0xff]
    %v414 = vld [vmem:[%s3 + $0x264] sm:$0xf]
    %v415 = vld [vmem:[%s3 + $0x268] sm:$0xff]
    %v416 = vld [vmem:[%s3 + $0x270] sm:$0xff]
    %v417 = vld [vmem:[%s3 + $0x278] sm:$0xff]
    %v418 = vld [vmem:[%s3 + $0x280] sm:$0xf]
    %v419 = vld [vmem:[%s3 + $0x284] sm:$0xff]
    %v420 = vld [vmem:[%s3 + $0x28c] sm:$0xff]
    %v421 = vld [vmem:[%s3 + $0x294] sm:$0xff]
    %v422 = vld [vmem:[%s3 + $0x29c] sm:$0xf]
    %v423 = vld [vmem:[%s3 + $0x2a0] sm:$0xff]
    %v424 = vld [vmem:[%s3 + $0x2a8] sm:$0xff]
    %v425 = vld [vmem:[%s3 + $0x2b0] sm:$0xff]
    %v426 = vld [vmem:[%s3 + $0x2b8] sm:$0xf]
    %v427 = vld [vmem:[%s3 + $0x2bc] sm:$0xff]
    %v428 = vld [vmem:[%s3 + $0x2c4] sm:$0xff]
    %v429 = vld [vmem:[%s3 + $0x2cc] sm:$0xff]
    %v430 = vld [vmem:[%s3 + $0x2d4] sm:$0xf]
    %v431 = vld [vmem:[%s3 + $0x2d8] sm:$0xff]
    %v432 = vld [vmem:[%s3 + $0x2e0] sm:$0xff]
    %v433 = vld [vmem:[%s3 + $0x2e8] sm:$0xff]
    %v434 = vld [vmem:[%s3 + $0x2f0] sm:$0xf]
    %v435 = vld [vmem:[%s3 + $0x2f4] sm:$0xff]
    %v436 = vld [vmem:[%s3 + $0x2fc] sm:$0xff]
    %v437 = vld [vmem:[%s3 + $0x304] sm:$0xff]
    %v438 = vld [vmem:[%s3 + $0x30c] sm:$0xf]
    %v439 = vld [vmem:[%s3 + $0x310] sm:$0xff]
    %v440 = vld [vmem:[%s3 + $0x318] sm:$0xff]
    %v441 = vld [vmem:[%s3 + $0x320] sm:$0xff]
    %v442 = vld [vmem:[%s3 + $0x328] sm:$0xf]
    %v443 = vld [vmem:[%s3 + $0x32c] sm:$0xff]
    %v444 = vld [vmem:[%s3 + $0x334] sm:$0xff]
    %v445 = vld [vmem:[%s3 + $0x33c] sm:$0xff]
    %v446 = vld [vmem:[%s3 + $0x344] sm:$0xf]
    %v447 = vld [vmem:[%s3 + $0x348] sm:$0xff]
    %v448 = vld [vmem:[%s3 + $0x350] sm:$0xff]
    %v449 = vld [vmem:[%s3 + $0x358] sm:$0xff]
    %v450 = vld [vmem:[%s3 + $0x360] sm:$0xf]
    %v451 = vld [vmem:[%s3 + $0x364] sm:$0xff]
    %v452 = vld [vmem:[%s3 + $0x36c] sm:$0xff]
    %v453 = vld [vmem:[%s3 + $0x374] sm:$0xff]
    %v454 = vld [vmem:[%s3 + $0x37c] sm:$0xf]
    %v455 = vld [vmem:[%s3 + $0x380] sm:$0xff]
    %v456 = vld [vmem:[%s3 + $0x388] sm:$0xff]
    %v457 = vld [vmem:[%s3 + $0x390] sm:$0xff]
    %v458 = vld [vmem:[%s3 + $0x398] sm:$0xf]
    %v459 = vld [vmem:[%s3 + $0x39c] sm:$0xff]
    %v460 = vld [vmem:[%s3 + $0x3a4] sm:$0xff]
    %v461 = vld [vmem:[%s3 + $0x3ac] sm:$0xff]
    %v462 = vld [vmem:[%s3 + $0x3b4] sm:$0xf]
    %v463 = vld [vmem:[%s3 + $0x3b8] sm:$0xff]
    %v464 = vld [vmem:[%s3 + $0x3c0] sm:$0xff]
    %v465 = vld [vmem:[%s3 + $0x3c8] sm:$0xff]
    %v466 = vld [vmem:[%s3 + $0x3d0] sm:$0xf]
    %v467 = vld [vmem:[%s3 + $0x3d4] sm:$0xff]
    %v468 = vld [vmem:[%s3 + $0x3dc] sm:$0xff]
    %v469 = vld [vmem:[%s3 + $0x3e4] sm:$0xff]
    %v470 = vld [vmem:[%s3 + $0x3ec] sm:$0xf]
    %v471 = vld [vmem:[%s3 + $0x3f0] sm:$0xff]
    %v472 = vld [vmem:[%s3 + $0x3f8] sm:$0xff]
    %v473 = vld [vmem:[%s3 + $0x400] sm:$0xff]
    %v474 = vld [vmem:[%s3 + $0x408] sm:$0xf]
    %v475 = vld [vmem:[%s3 + $0x40c] sm:$0xff]
    %v476 = vld [vmem:[%s3 + $0x414] sm:$0xff]
    %v477 = vld [vmem:[%s3 + $0x41c] sm:$0xff]
    %v478 = vld [vmem:[%s3 + $0x424] sm:$0xf]
    %v479 = vld [vmem:[%s3 + $0x428] sm:$0xff]
    %v480 = vld [vmem:[%s3 + $0x430] sm:$0xff]
    %v481 = vld [vmem:[%s3 + $0x438] sm:$0xff]
    %v482 = vld [vmem:[%s3 + $0x440] sm:$0xf]
    %v483 = vld [vmem:[%s3 + $0x444] sm:$0xff]
    %v484 = vld [vmem:[%s3 + $0x44c] sm:$0xff]
    %v485 = vld [vmem:[%s3 + $0x454] sm:$0xff]
    %v486 = vld [vmem:[%s3 + $0x45c] sm:$0xf]
    %v487 = vld [vmem:[%s3 + $0x460] sm:$0xff]
    %v488 = vld [vmem:[%s3 + $0x468] sm:$0xff]
    %v489 = vld [vmem:[%s3 + $0x470] sm:$0xff]
    %v490 = vld [vmem:[%s3 + $0x478] sm:$0xf]
    %v491 = vld [vmem:[%s3 + $0x47c] sm:$0xff]
    %v492 = vld [vmem:[%s3 + $0x484] sm:$0xff]
    %v493 = vld [vmem:[%s3 + $0x48c] sm:$0xff]
    %v494 = vld [vmem:[%s3 + $0x494] sm:$0xf]
    %v495 = vld [vmem:[%s3 + $0x498] sm:$0xff]
    %v496 = vld [vmem:[%s3 + $0x4a0] sm:$0xff]
    %v497 = vld [vmem:[%s3 + $0x4a8] sm:$0xff]
    %v498 = vld [vmem:[%s3 + $0x4b0] sm:$0xf]
    %v499 = vld [vmem:[%s3 + $0x4b4] sm:$0xff]
    %v500 = vld [vmem:[%s3 + $0x4bc] sm:$0xff]
    %v501 = vld [vmem:[%s3 + $0x4c4] sm:$0xff]
    %v502 = vld [vmem:[%s3 + $0x4cc] sm:$0xf]
    %v503 = vld [vmem:[%s3 + $0x4d0] sm:$0xff]
    %v504 = vld [vmem:[%s3 + $0x4d8] sm:$0xff]
    %v505 = vld [vmem:[%s3 + $0x4e0] sm:$0xff]
    %v506 = vld [vmem:[%s3 + $0x4e8] sm:$0xf]
    %v507 = vld [vmem:[%s3 + $0x4ec] sm:$0xff]
    %v508 = vld [vmem:[%s3 + $0x4f4] sm:$0xff]
    %v509 = vld [vmem:[%s3 + $0x4fc] sm:$0xff]
    %v510 = vld [vmem:[%s3 + $0x504] sm:$0xf]
    %v511 = vld [vmem:[%s3 + $0x508] sm:$0xff]
    %v512 = vld [vmem:[%s3 + $0x510] sm:$0xff]
    %v513 = vld [vmem:[%s3 + $0x518] sm:$0xff]
    %v514 = vld [vmem:[%s3 + $0x520] sm:$0xf]
    %v515 = vld [vmem:[%s3 + $0x524] sm:$0xff]
    %v516 = vld [vmem:[%s3 + $0x52c] sm:$0xff]
    %v517 = vld [vmem:[%s3 + $0x534] sm:$0xff]
    %v518 = vld [vmem:[%s3 + $0x53c] sm:$0xf]
    %v519 = vld [vmem:[%s3 + $0x540] sm:$0xff]
    %v520 = vld [vmem:[%s3 + $0x548] sm:$0xff]
    %v521 = vld [vmem:[%s3 + $0x550] sm:$0xff]
    %v522 = vld [vmem:[%s3 + $0x558] sm:$0xf]
    %v523 = vld [vmem:[%s3 + $0x55c] sm:$0xff]
    %v524 = vld [vmem:[%s3 + $0x564] sm:$0xff]
    %v525 = vld [vmem:[%s3 + $0x56c] sm:$0xff]
    %v526 = vld [vmem:[%s3 + $0x574] sm:$0xf]
    %v527 = vld [vmem:[%s3 + $0x578] sm:$0xff]
    %v528 = vld [vmem:[%s3 + $0x580] sm:$0xff]
    %v529 = vld [vmem:[%s3 + $0x588] sm:$0xff]
    %v530 = vld [vmem:[%s3 + $0x590] sm:$0xf]
    %v531 = vld [vmem:[%s3 + $0x594] sm:$0xff]
    %v532 = vld [vmem:[%s3 + $0x59c] sm:$0xff]
    %v533 = vld [vmem:[%s3 + $0x5a4] sm:$0xff]
    %v534 = vld [vmem:[%s3 + $0x5ac] sm:$0xf]
    %v535 = vld [vmem:[%s3 + $0x5b0] sm:$0xff]
    %v536 = vld [vmem:[%s3 + $0x5b8] sm:$0xff]
    %v537 = vld [vmem:[%s3 + $0x5c0] sm:$0xff]
    %v538 = vld [vmem:[%s3 + $0x5c8] sm:$0xf]
    %v539 = vld [vmem:[%s3 + $0x5cc] sm:$0xff]
    %v540 = vld [vmem:[%s3 + $0x5d4] sm:$0xff]
    %v541 = vld [vmem:[%s3 + $0x5dc] sm:$0xff]
    %v542 = vld [vmem:[%s3 + $0x5e4] sm:$0xf]
    %v543 = vld [vmem:[%s3 + $0x5e8] sm:$0xff]
    %v544 = vld [vmem:[%s3 + $0x5f0] sm:$0xff]
    %v545 = vld [vmem:[%s3 + $0x5f8] sm:$0xff]
    %v546 = vld [vmem:[%s3 + $0x600] sm:$0xf]
    %v547 = vld [vmem:[%s3 + $0x604] sm:$0xff]
    %v548 = vld [vmem:[%s3 + $0x60c] sm:$0xff]
    %v549 = vld [vmem:[%s3 + $0x614] sm:$0xff]
    %v550 = vld [vmem:[%s3 + $0x61c] sm:$0xf]
    %v551 = vld [vmem:[%s3 + $0x620] sm:$0xff]
    %v552 = vld [vmem:[%s3 + $0x628] sm:$0xff]
    %v553 = vld [vmem:[%s3 + $0x630] sm:$0xff]
    %v554 = vld [vmem:[%s3 + $0x638] sm:$0xf]
    %v555 = vld [vmem:[%s3 + $0x63c] sm:$0xff]
    %v556 = vld [vmem:[%s3 + $0x644] sm:$0xff]
    %v557 = vld [vmem:[%s3 + $0x64c] sm:$0xff]
    %v558 = vld [vmem:[%s3 + $0x654] sm:$0xf]
    %v559 = vld [vmem:[%s3 + $0x658] sm:$0xff]
    %v560 = vld [vmem:[%s3 + $0x660] sm:$0xff]
    %v561 = vld [vmem:[%s3 + $0x668] sm:$0xff]
    %v562 = vld [vmem:[%s3 + $0x670] sm:$0xf]
    %v563 = vld [vmem:[%s3 + $0x674] sm:$0xff]
    %v564 = vld [vmem:[%s3 + $0x67c] sm:$0xff]
    %v565 = vld [vmem:[%s3 + $0x684] sm:$0xff]
    %v566 = vld [vmem:[%s3 + $0x68c] sm:$0xf]
    %v567 = vld [vmem:[%s3 + $0x690] sm:$0xff]
    %v568 = vld [vmem:[%s3 + $0x698] sm:$0xff]
    %v569 = vld [vmem:[%s3 + $0x6a0] sm:$0xff]
    %v570 = vld [vmem:[%s3 + $0x6a8] sm:$0xf]
    %v571 = vld [vmem:[%s3 + $0x6ac] sm:$0xff]
    %v572 = vld [vmem:[%s3 + $0x6b4] sm:$0xff]
    %v573 = vld [vmem:[%s3 + $0x6bc] sm:$0xff]
    %v574 = vld [vmem:[%s3 + $0x6c4] sm:$0xf]
    %v575 = vld [vmem:[%s3 + $0x6c8] sm:$0xff]
    %v576 = vld [vmem:[%s3 + $0x6d0] sm:$0xff]
    %v577 = vld [vmem:[%s3 + $0x6d8] sm:$0xff]
    %v578 = vld [vmem:[%s3 + $0x6e0] sm:$0xf]
    %v579 = vld [vmem:[%s3 + $0x6e4] sm:$0xff]
    %v580 = vld [vmem:[%s3 + $0x6ec] sm:$0xff]
    %v581 = vld [vmem:[%s3 + $0x6f4] sm:$0xff]
    %v582 = vld [vmem:[%s3 + $0x6fc] sm:$0xf]
    %v583 = vld [vmem:[%s4] sm:$0x7f]
    %v585 = vlaneseq
    %v586 = vshrl.u32 %v585, 7
    %v587 = vsub.s32 0, %v586
    %v588 = vrot.slane %v583, %v587
    %v589 = vlaneseq
    %v590 = vshrl.u32 %v589, 7
    %v591 = vsub.s32 1, %v590
    %v592 = vrot.slane %v583, %v591
    %v593 = vlaneseq
    %v594 = vshrl.u32 %v593, 7
    %v595 = vsub.s32 2, %v594
    %v596 = vrot.slane %v583, %v595
    %v597 = vlaneseq
    %v598 = vshrl.u32 %v597, 7
    %v599 = vsub.s32 3, %v598
    %v600 = vrot.slane %v583, %v599
    %v601 = vlaneseq
    %v602 = vshrl.u32 %v601, 7
    %v603 = vsub.s32 4, %v602
    %v604 = vrot.slane %v583, %v603
    %v605 = vlaneseq
    %v606 = vshrl.u32 %v605, 7
    %v607 = vsub.s32 5, %v606
    %v608 = vrot.slane %v583, %v607
    %v609 = vlaneseq
    %v610 = vshrl.u32 %v609, 7
    %v611 = vsub.s32 6, %v610
    %v612 = vrot.slane %v583, %v611
    %v876 = vunpack.c.l.b16 %v327
    %v877 = vunpack.c.h.b16 %v327
    %v878 = vunpack.c.l.b16 %v328
    %v879 = vunpack.c.h.b16 %v328
    %v880 = vunpack.c.l.b16 %v329
    %v881 = vunpack.c.h.b16 %v329
    %v882 = vunpack.c.l.b16 %v330
    %v883 = vunpack.c.l.b16 %v331
    %v884 = vunpack.c.h.b16 %v331
    %v885 = vunpack.c.l.b16 %v332
    %v886 = vunpack.c.h.b16 %v332
    %v887 = vunpack.c.l.b16 %v333
    %v888 = vunpack.c.h.b16 %v333
    %v889 = vunpack.c.l.b16 %v334
    %v890 = vunpack.c.l.b16 %v335
    %v891 = vunpack.c.h.b16 %v335
    %v892 = vunpack.c.l.b16 %v336
    %v893 = vunpack.c.h.b16 %v336
    %v894 = vunpack.c.l.b16 %v337
    %v895 = vunpack.c.h.b16 %v337
    %v896 = vunpack.c.l.b16 %v338
    %v897 = vunpack.c.l.b16 %v339
    %v898 = vunpack.c.h.b16 %v339
    %v899 = vunpack.c.l.b16 %v340
    %v900 = vunpack.c.h.b16 %v340
    %v901 = vunpack.c.l.b16 %v341
    %v902 = vunpack.c.h.b16 %v341
    %v903 = vunpack.c.l.b16 %v342
    %v904 = vunpack.c.l.b16 %v343
    %v905 = vunpack.c.h.b16 %v343
    %v906 = vunpack.c.l.b16 %v344
    %v907 = vunpack.c.h.b16 %v344
    %v908 = vunpack.c.l.b16 %v345
    %v909 = vunpack.c.h.b16 %v345
    %v910 = vunpack.c.l.b16 %v346
    %v911 = vunpack.c.l.b16 %v347
    %v912 = vunpack.c.h.b16 %v347
    %v913 = vunpack.c.l.b16 %v348
    %v914 = vunpack.c.h.b16 %v348
    %v915 = vunpack.c.l.b16 %v349
    %v916 = vunpack.c.h.b16 %v349
    %v917 = vunpack.c.l.b16 %v350
    %v918 = vunpack.c.l.b16 %v351
    %v919 = vunpack.c.h.b16 %v351
    %v920 = vunpack.c.l.b16 %v352
    %v921 = vunpack.c.h.b16 %v352
    %v922 = vunpack.c.l.b16 %v353
    %v923 = vunpack.c.h.b16 %v353
    %v924 = vunpack.c.l.b16 %v354
    %v925 = vunpack.c.l.b16 %v355
    %v926 = vunpack.c.h.b16 %v355
    %v927 = vunpack.c.l.b16 %v356
    %v928 = vunpack.c.h.b16 %v356
    %v929 = vunpack.c.l.b16 %v357
    %v930 = vunpack.c.h.b16 %v357
    %v931 = vunpack.c.l.b16 %v358
    %v932 = vunpack.c.l.b16 %v359
    %v933 = vunpack.c.h.b16 %v359
    %v934 = vunpack.c.l.b16 %v360
    %v935 = vunpack.c.h.b16 %v360
    %v936 = vunpack.c.l.b16 %v361
    %v937 = vunpack.c.h.b16 %v361
    %v938 = vunpack.c.l.b16 %v362
    %v939 = vunpack.c.l.b16 %v363
    %v940 = vunpack.c.h.b16 %v363
    %v941 = vunpack.c.l.b16 %v364
    %v942 = vunpack.c.h.b16 %v364
    %v943 = vunpack.c.l.b16 %v365
    %v944 = vunpack.c.h.b16 %v365
    %v945 = vunpack.c.l.b16 %v366
    %v946 = vunpack.c.l.b16 %v367
    %v947 = vunpack.c.h.b16 %v367
    %v948 = vunpack.c.l.b16 %v368
    %v949 = vunpack.c.h.b16 %v368
    %v950 = vunpack.c.l.b16 %v369
    %v951 = vunpack.c.h.b16 %v369
    %v952 = vunpack.c.l.b16 %v370
    %v953 = vunpack.c.l.b16 %v371
    %v954 = vunpack.c.h.b16 %v371
    %v955 = vunpack.c.l.b16 %v372
    %v956 = vunpack.c.h.b16 %v372
    %v957 = vunpack.c.l.b16 %v373
    %v958 = vunpack.c.h.b16 %v373
    %v959 = vunpack.c.l.b16 %v374
    %v960 = vunpack.c.l.b16 %v375
    %v961 = vunpack.c.h.b16 %v375
    %v962 = vunpack.c.l.b16 %v376
    %v963 = vunpack.c.h.b16 %v376
    %v964 = vunpack.c.l.b16 %v377
    %v965 = vunpack.c.h.b16 %v377
    %v966 = vunpack.c.l.b16 %v378
    %v967 = vunpack.c.l.b16 %v379
    %v968 = vunpack.c.h.b16 %v379
    %v969 = vunpack.c.l.b16 %v380
    %v970 = vunpack.c.h.b16 %v380
    %v971 = vunpack.c.l.b16 %v381
    %v972 = vunpack.c.h.b16 %v381
    %v973 = vunpack.c.l.b16 %v382
    %v974 = vunpack.c.l.b16 %v383
    %v975 = vunpack.c.h.b16 %v383
    %v976 = vunpack.c.l.b16 %v384
    %v977 = vunpack.c.h.b16 %v384
    %v978 = vunpack.c.l.b16 %v385
    %v979 = vunpack.c.h.b16 %v385
    %v980 = vunpack.c.l.b16 %v386
    %v981 = vunpack.c.l.b16 %v387
    %v982 = vunpack.c.h.b16 %v387
    %v983 = vunpack.c.l.b16 %v388
    %v984 = vunpack.c.h.b16 %v388
    %v985 = vunpack.c.l.b16 %v389
    %v986 = vunpack.c.h.b16 %v389
    %v987 = vunpack.c.l.b16 %v390
    %v988 = vunpack.c.l.b16 %v391
    %v989 = vunpack.c.h.b16 %v391
    %v990 = vunpack.c.l.b16 %v392
    %v991 = vunpack.c.h.b16 %v392
    %v992 = vunpack.c.l.b16 %v393
    %v993 = vunpack.c.h.b16 %v393
    %v994 = vunpack.c.l.b16 %v394
    %v995 = vunpack.c.l.b16 %v395
    %v996 = vunpack.c.h.b16 %v395
    %v997 = vunpack.c.l.b16 %v396
    %v998 = vunpack.c.h.b16 %v396
    %v999 = vunpack.c.l.b16 %v397
    %v1000 = vunpack.c.h.b16 %v397
    %v1001 = vunpack.c.l.b16 %v398
    %v1002 = vunpack.c.l.b16 %v399
    %v1003 = vunpack.c.h.b16 %v399
    %v1004 = vunpack.c.l.b16 %v400
    %v1005 = vunpack.c.h.b16 %v400
    %v1006 = vunpack.c.l.b16 %v401
    %v1007 = vunpack.c.h.b16 %v401
    %v1008 = vunpack.c.l.b16 %v402
    %v1009 = vunpack.c.l.b16 %v403
    %v1010 = vunpack.c.h.b16 %v403
    %v1011 = vunpack.c.l.b16 %v404
    %v1012 = vunpack.c.h.b16 %v404
    %v1013 = vunpack.c.l.b16 %v405
    %v1014 = vunpack.c.h.b16 %v405
    %v1015 = vunpack.c.l.b16 %v406
    %v1016 = vunpack.c.l.b16 %v407
    %v1017 = vunpack.c.h.b16 %v407
    %v1018 = vunpack.c.l.b16 %v408
    %v1019 = vunpack.c.h.b16 %v408
    %v1020 = vunpack.c.l.b16 %v409
    %v1021 = vunpack.c.h.b16 %v409
    %v1022 = vunpack.c.l.b16 %v410
    %v1023 = vunpack.c.l.b16 %v411
    %v1024 = vunpack.c.h.b16 %v411
    %v1025 = vunpack.c.l.b16 %v412
    %v1026 = vunpack.c.h.b16 %v412
    %v1027 = vunpack.c.l.b16 %v413
    %v1028 = vunpack.c.h.b16 %v413
    %v1029 = vunpack.c.l.b16 %v414
    %v1030 = vunpack.c.l.b16 %v415
    %v1031 = vunpack.c.h.b16 %v415
    %v1032 = vunpack.c.l.b16 %v416
    %v1033 = vunpack.c.h.b16 %v416
    %v1034 = vunpack.c.l.b16 %v417
    %v1035 = vunpack.c.h.b16 %v417
    %v1036 = vunpack.c.l.b16 %v418
    %v1037 = vunpack.c.l.b16 %v419
    %v1038 = vunpack.c.h.b16 %v419
    %v1039 = vunpack.c.l.b16 %v420
    %v1040 = vunpack.c.h.b16 %v420
    %v1041 = vunpack.c.l.b16 %v421
    %v1042 = vunpack.c.h.b16 %v421
    %v1043 = vunpack.c.l.b16 %v422
    %v1044 = vunpack.c.l.b16 %v423
    %v1045 = vunpack.c.h.b16 %v423
    %v1046 = vunpack.c.l.b16 %v424
    %v1047 = vunpack.c.h.b16 %v424
    %v1048 = vunpack.c.l.b16 %v425
    %v1049 = vunpack.c.h.b16 %v425
    %v1050 = vunpack.c.l.b16 %v426
    %v1051 = vunpack.c.l.b16 %v427
    %v1052 = vunpack.c.h.b16 %v427
    %v1053 = vunpack.c.l.b16 %v428
    %v1054 = vunpack.c.h.b16 %v428
    %v1055 = vunpack.c.l.b16 %v429
    %v1056 = vunpack.c.h.b16 %v429
    %v1057 = vunpack.c.l.b16 %v430
    %v1058 = vunpack.c.l.b16 %v431
    %v1059 = vunpack.c.h.b16 %v431
    %v1060 = vunpack.c.l.b16 %v432
    %v1061 = vunpack.c.h.b16 %v432
    %v1062 = vunpack.c.l.b16 %v433
    %v1063 = vunpack.c.h.b16 %v433
    %v1064 = vunpack.c.l.b16 %v434
    %v1065 = vunpack.c.l.b16 %v435
    %v1066 = vunpack.c.h.b16 %v435
    %v1067 = vunpack.c.l.b16 %v436
    %v1068 = vunpack.c.h.b16 %v436
    %v1069 = vunpack.c.l.b16 %v437
    %v1070 = vunpack.c.h.b16 %v437
    %v1071 = vunpack.c.l.b16 %v438
    %v1072 = vunpack.c.l.b16 %v439
    %v1073 = vunpack.c.h.b16 %v439
    %v1074 = vunpack.c.l.b16 %v440
    %v1075 = vunpack.c.h.b16 %v440
    %v1076 = vunpack.c.l.b16 %v441
    %v1077 = vunpack.c.h.b16 %v441
    %v1078 = vunpack.c.l.b16 %v442
    %v1079 = vunpack.c.l.b16 %v443
    %v1080 = vunpack.c.h.b16 %v443
    %v1081 = vunpack.c.l.b16 %v444
    %v1082 = vunpack.c.h.b16 %v444
    %v1083 = vunpack.c.l.b16 %v445
    %v1084 = vunpack.c.h.b16 %v445
    %v1085 = vunpack.c.l.b16 %v446
    %v1086 = vunpack.c.l.b16 %v447
    %v1087 = vunpack.c.h.b16 %v447
    %v1088 = vunpack.c.l.b16 %v448
    %v1089 = vunpack.c.h.b16 %v448
    %v1090 = vunpack.c.l.b16 %v449
    %v1091 = vunpack.c.h.b16 %v449
    %v1092 = vunpack.c.l.b16 %v450
    %v1093 = vunpack.c.l.b16 %v451
    %v1094 = vunpack.c.h.b16 %v451
    %v1095 = vunpack.c.l.b16 %v452
    %v1096 = vunpack.c.h.b16 %v452
    %v1097 = vunpack.c.l.b16 %v453
    %v1098 = vunpack.c.h.b16 %v453
    %v1099 = vunpack.c.l.b16 %v454
    %v1100 = vunpack.c.l.b16 %v455
    %v1101 = vunpack.c.h.b16 %v455
    %v1102 = vunpack.c.l.b16 %v456
    %v1103 = vunpack.c.h.b16 %v456
    %v1104 = vunpack.c.l.b16 %v457
    %v1105 = vunpack.c.h.b16 %v457
    %v1106 = vunpack.c.l.b16 %v458
    %v1107 = vunpack.c.l.b16 %v459
    %v1108 = vunpack.c.h.b16 %v459
    %v1109 = vunpack.c.l.b16 %v460
    %v1110 = vunpack.c.h.b16 %v460
    %v1111 = vunpack.c.l.b16 %v461
    %v1112 = vunpack.c.h.b16 %v461
    %v1113 = vunpack.c.l.b16 %v462
    %v1114 = vunpack.c.l.b16 %v463
    %v1115 = vunpack.c.h.b16 %v463
    %v1116 = vunpack.c.l.b16 %v464
    %v1117 = vunpack.c.h.b16 %v464
    %v1118 = vunpack.c.l.b16 %v465
    %v1119 = vunpack.c.h.b16 %v465
    %v1120 = vunpack.c.l.b16 %v466
    %v1121 = vunpack.c.l.b16 %v467
    %v1122 = vunpack.c.h.b16 %v467
    %v1123 = vunpack.c.l.b16 %v468
    %v1124 = vunpack.c.h.b16 %v468
    %v1125 = vunpack.c.l.b16 %v469
    %v1126 = vunpack.c.h.b16 %v469
    %v1127 = vunpack.c.l.b16 %v470
    %v1128 = vunpack.c.l.b16 %v471
    %v1129 = vunpack.c.h.b16 %v471
    %v1130 = vunpack.c.l.b16 %v472
    %v1131 = vunpack.c.h.b16 %v472
    %v1132 = vunpack.c.l.b16 %v473
    %v1133 = vunpack.c.h.b16 %v473
    %v1134 = vunpack.c.l.b16 %v474
    %v1135 = vunpack.c.l.b16 %v475
    %v1136 = vunpack.c.h.b16 %v475
    %v1137 = vunpack.c.l.b16 %v476
    %v1138 = vunpack.c.h.b16 %v476
    %v1139 = vunpack.c.l.b16 %v477
    %v1140 = vunpack.c.h.b16 %v477
    %v1141 = vunpack.c.l.b16 %v478
    %v1142 = vunpack.c.l.b16 %v479
    %v1143 = vunpack.c.h.b16 %v479
    %v1144 = vunpack.c.l.b16 %v480
    %v1145 = vunpack.c.h.b16 %v480
    %v1146 = vunpack.c.l.b16 %v481
    %v1147 = vunpack.c.h.b16 %v481
    %v1148 = vunpack.c.l.b16 %v482
    %v1149 = vunpack.c.l.b16 %v483
    %v1150 = vunpack.c.h.b16 %v483
    %v1151 = vunpack.c.l.b16 %v484
    %v1152 = vunpack.c.h.b16 %v484
    %v1153 = vunpack.c.l.b16 %v485
    %v1154 = vunpack.c.h.b16 %v485
    %v1155 = vunpack.c.l.b16 %v486
    %v1156 = vunpack.c.l.b16 %v487
    %v1157 = vunpack.c.h.b16 %v487
    %v1158 = vunpack.c.l.b16 %v488
    %v1159 = vunpack.c.h.b16 %v488
    %v1160 = vunpack.c.l.b16 %v489
    %v1161 = vunpack.c.h.b16 %v489
    %v1162 = vunpack.c.l.b16 %v490
    %v1163 = vunpack.c.l.b16 %v491
    %v1164 = vunpack.c.h.b16 %v491
    %v1165 = vunpack.c.l.b16 %v492
    %v1166 = vunpack.c.h.b16 %v492
    %v1167 = vunpack.c.l.b16 %v493
    %v1168 = vunpack.c.h.b16 %v493
    %v1169 = vunpack.c.l.b16 %v494
    %v1170 = vunpack.c.l.b16 %v495
    %v1171 = vunpack.c.h.b16 %v495
    %v1172 = vunpack.c.l.b16 %v496
    %v1173 = vunpack.c.h.b16 %v496
    %v1174 = vunpack.c.l.b16 %v497
    %v1175 = vunpack.c.h.b16 %v497
    %v1176 = vunpack.c.l.b16 %v498
    %v1177 = vunpack.c.l.b16 %v499
    %v1178 = vunpack.c.h.b16 %v499
    %v1179 = vunpack.c.l.b16 %v500
    %v1180 = vunpack.c.h.b16 %v500
    %v1181 = vunpack.c.l.b16 %v501
    %v1182 = vunpack.c.h.b16 %v501
    %v1183 = vunpack.c.l.b16 %v502
    %v1184 = vunpack.c.l.b16 %v503
    %v1185 = vunpack.c.h.b16 %v503
    %v1186 = vunpack.c.l.b16 %v504
    %v1187 = vunpack.c.h.b16 %v504
    %v1188 = vunpack.c.l.b16 %v505
    %v1189 = vunpack.c.h.b16 %v505
    %v1190 = vunpack.c.l.b16 %v506
    %v1191 = vunpack.c.l.b16 %v507
    %v1192 = vunpack.c.h.b16 %v507
    %v1193 = vunpack.c.l.b16 %v508
    %v1194 = vunpack.c.h.b16 %v508
    %v1195 = vunpack.c.l.b16 %v509
    %v1196 = vunpack.c.h.b16 %v509
    %v1197 = vunpack.c.l.b16 %v510
    %v1198 = vunpack.c.l.b16 %v511
    %v1199 = vunpack.c.h.b16 %v511
    %v1200 = vunpack.c.l.b16 %v512
    %v1201 = vunpack.c.h.b16 %v512
    %v1202 = vunpack.c.l.b16 %v513
    %v1203 = vunpack.c.h.b16 %v513
    %v1204 = vunpack.c.l.b16 %v514
    %v1205 = vunpack.c.l.b16 %v515
    %v1206 = vunpack.c.h.b16 %v515
    %v1207 = vunpack.c.l.b16 %v516
    %v1208 = vunpack.c.h.b16 %v516
    %v1209 = vunpack.c.l.b16 %v517
    %v1210 = vunpack.c.h.b16 %v517
    %v1211 = vunpack.c.l.b16 %v518
    %v1212 = vunpack.c.l.b16 %v519
    %v1213 = vunpack.c.h.b16 %v519
    %v1214 = vunpack.c.l.b16 %v520
    %v1215 = vunpack.c.h.b16 %v520
    %v1216 = vunpack.c.l.b16 %v521
    %v1217 = vunpack.c.h.b16 %v521
    %v1218 = vunpack.c.l.b16 %v522
    %v1219 = vunpack.c.l.b16 %v523
    %v1220 = vunpack.c.h.b16 %v523
    %v1221 = vunpack.c.l.b16 %v524
    %v1222 = vunpack.c.h.b16 %v524
    %v1223 = vunpack.c.l.b16 %v525
    %v1224 = vunpack.c.h.b16 %v525
    %v1225 = vunpack.c.l.b16 %v526
    %v1226 = vunpack.c.l.b16 %v527
    %v1227 = vunpack.c.h.b16 %v527
    %v1228 = vunpack.c.l.b16 %v528
    %v1229 = vunpack.c.h.b16 %v528
    %v1230 = vunpack.c.l.b16 %v529
    %v1231 = vunpack.c.h.b16 %v529
    %v1232 = vunpack.c.l.b16 %v530
    %v1233 = vunpack.c.l.b16 %v531
    %v1234 = vunpack.c.h.b16 %v531
    %v1235 = vunpack.c.l.b16 %v532
    %v1236 = vunpack.c.h.b16 %v532
    %v1237 = vunpack.c.l.b16 %v533
    %v1238 = vunpack.c.h.b16 %v533
    %v1239 = vunpack.c.l.b16 %v534
    %v1240 = vunpack.c.l.b16 %v535
    %v1241 = vunpack.c.h.b16 %v535
    %v1242 = vunpack.c.l.b16 %v536
    %v1243 = vunpack.c.h.b16 %v536
    %v1244 = vunpack.c.l.b16 %v537
    %v1245 = vunpack.c.h.b16 %v537
    %v1246 = vunpack.c.l.b16 %v538
    %v1247 = vunpack.c.l.b16 %v539
    %v1248 = vunpack.c.h.b16 %v539
    %v1249 = vunpack.c.l.b16 %v540
    %v1250 = vunpack.c.h.b16 %v540
    %v1251 = vunpack.c.l.b16 %v541
    %v1252 = vunpack.c.h.b16 %v541
    %v1253 = vunpack.c.l.b16 %v542
    %v1254 = vunpack.c.l.b16 %v543
    %v1255 = vunpack.c.h.b16 %v543
    %v1256 = vunpack.c.l.b16 %v544
    %v1257 = vunpack.c.h.b16 %v544
    %v1258 = vunpack.c.l.b16 %v545
    %v1259 = vunpack.c.h.b16 %v545
    %v1260 = vunpack.c.l.b16 %v546
    %v1261 = vunpack.c.l.b16 %v547
    %v1262 = vunpack.c.h.b16 %v547
    %v1263 = vunpack.c.l.b16 %v548
    %v1264 = vunpack.c.h.b16 %v548
    %v1265 = vunpack.c.l.b16 %v549
    %v1266 = vunpack.c.h.b16 %v549
    %v1267 = vunpack.c.l.b16 %v550
    %v1268 = vunpack.c.l.b16 %v551
    %v1269 = vunpack.c.h.b16 %v551
    %v1270 = vunpack.c.l.b16 %v552
    %v1271 = vunpack.c.h.b16 %v552
    %v1272 = vunpack.c.l.b16 %v553
    %v1273 = vunpack.c.h.b16 %v553
    %v1274 = vunpack.c.l.b16 %v554
    %v1275 = vunpack.c.l.b16 %v555
    %v1276 = vunpack.c.h.b16 %v555
    %v1277 = vunpack.c.l.b16 %v556
    %v1278 = vunpack.c.h.b16 %v556
    %v1279 = vunpack.c.l.b16 %v557
    %v1280 = vunpack.c.h.b16 %v557
    %v1281 = vunpack.c.l.b16 %v558
    %v1282 = vunpack.c.l.b16 %v559
    %v1283 = vunpack.c.h.b16 %v559
    %v1284 = vunpack.c.l.b16 %v560
    %v1285 = vunpack.c.h.b16 %v560
    %v1286 = vunpack.c.l.b16 %v561
    %v1287 = vunpack.c.h.b16 %v561
    %v1288 = vunpack.c.l.b16 %v562
    %v1289 = vunpack.c.l.b16 %v563
    %v1290 = vunpack.c.h.b16 %v563
    %v1291 = vunpack.c.l.b16 %v564
    %v1292 = vunpack.c.h.b16 %v564
    %v1293 = vunpack.c.l.b16 %v565
    %v1294 = vunpack.c.h.b16 %v565
    %v1295 = vunpack.c.l.b16 %v566
    %v1296 = vunpack.c.l.b16 %v567
    %v1297 = vunpack.c.h.b16 %v567
    %v1298 = vunpack.c.l.b16 %v568
    %v1299 = vunpack.c.h.b16 %v568
    %v1300 = vunpack.c.l.b16 %v569
    %v1301 = vunpack.c.h.b16 %v569
    %v1302 = vunpack.c.l.b16 %v570
    %v1303 = vunpack.c.l.b16 %v571
    %v1304 = vunpack.c.h.b16 %v571
    %v1305 = vunpack.c.l.b16 %v572
    %v1306 = vunpack.c.h.b16 %v572
    %v1307 = vunpack.c.l.b16 %v573
    %v1308 = vunpack.c.h.b16 %v573
    %v1309 = vunpack.c.l.b16 %v574
    %v1310 = vunpack.c.l.b16 %v575
    %v1311 = vunpack.c.h.b16 %v575
    %v1312 = vunpack.c.l.b16 %v576
    %v1313 = vunpack.c.h.b16 %v576
    %v1314 = vunpack.c.l.b16 %v577
    %v1315 = vunpack.c.h.b16 %v577
    %v1316 = vunpack.c.l.b16 %v578
    %v1317 = vunpack.c.l.b16 %v579
    %v1318 = vunpack.c.h.b16 %v579
    %v1319 = vunpack.c.l.b16 %v580
    %v1320 = vunpack.c.h.b16 %v580
    %v1321 = vunpack.c.l.b16 %v581
    %v1322 = vunpack.c.h.b16 %v581
    %v1323 = vunpack.c.l.b16 %v582
    %v1324 = vpack.c.b16 %v883, %v876
    %v1325 = vpack.c.b16 %v884, %v877
    %v1326 = vpack.c.b16 %v885, %v878
    %v1327 = vpack.c.b16 %v886, %v879
    %v1328 = vpack.c.b16 %v887, %v880
    %v1329 = vpack.c.b16 %v888, %v881
    %v1330 = vpack.c.b16 %v889, %v882
    %v1331 = vpack.c.b16 %v897, %v890
    %v1332 = vpack.c.b16 %v898, %v891
    %v1333 = vpack.c.b16 %v899, %v892
    %v1334 = vpack.c.b16 %v900, %v893
    %v1335 = vpack.c.b16 %v901, %v894
    %v1336 = vpack.c.b16 %v902, %v895
    %v1337 = vpack.c.b16 %v903, %v896
    %v1338 = vpack.c.b16 %v911, %v904
    %v1339 = vpack.c.b16 %v912, %v905
    %v1340 = vpack.c.b16 %v913, %v906
    %v1341 = vpack.c.b16 %v914, %v907
    %v1342 = vpack.c.b16 %v915, %v908
    %v1343 = vpack.c.b16 %v916, %v909
    %v1344 = vpack.c.b16 %v917, %v910
    %v1345 = vpack.c.b16 %v925, %v918
    %v1346 = vpack.c.b16 %v926, %v919
    %v1347 = vpack.c.b16 %v927, %v920
    %v1348 = vpack.c.b16 %v928, %v921
    %v1349 = vpack.c.b16 %v929, %v922
    %v1350 = vpack.c.b16 %v930, %v923
    %v1351 = vpack.c.b16 %v931, %v924
    %v1352 = vpack.c.b16 %v939, %v932
    %v1353 = vpack.c.b16 %v940, %v933
    %v1354 = vpack.c.b16 %v941, %v934
    %v1355 = vpack.c.b16 %v942, %v935
    %v1356 = vpack.c.b16 %v943, %v936
    %v1357 = vpack.c.b16 %v944, %v937
    %v1358 = vpack.c.b16 %v945, %v938
    %v1359 = vpack.c.b16 %v953, %v946
    %v1360 = vpack.c.b16 %v954, %v947
    %v1361 = vpack.c.b16 %v955, %v948
    %v1362 = vpack.c.b16 %v956, %v949
    %v1363 = vpack.c.b16 %v957, %v950
    %v1364 = vpack.c.b16 %v958, %v951
    %v1365 = vpack.c.b16 %v959, %v952
    %v1366 = vpack.c.b16 %v967, %v960
    %v1367 = vpack.c.b16 %v968, %v961
    %v1368 = vpack.c.b16 %v969, %v962
    %v1369 = vpack.c.b16 %v970, %v963
    %v1370 = vpack.c.b16 %v971, %v964
    %v1371 = vpack.c.b16 %v972, %v965
    %v1372 = vpack.c.b16 %v973, %v966
    %v1373 = vpack.c.b16 %v981, %v974
    %v1374 = vpack.c.b16 %v982, %v975
    %v1375 = vpack.c.b16 %v983, %v976
    %v1376 = vpack.c.b16 %v984, %v977
    %v1377 = vpack.c.b16 %v985, %v978
    %v1378 = vpack.c.b16 %v986, %v979
    %v1379 = vpack.c.b16 %v987, %v980
    %v1380 = vpack.c.b16 %v995, %v988
    %v1381 = vpack.c.b16 %v996, %v989
    %v1382 = vpack.c.b16 %v997, %v990
    %v1383 = vpack.c.b16 %v998, %v991
    %v1384 = vpack.c.b16 %v999, %v992
    %v1385 = vpack.c.b16 %v1000, %v993
    %v1386 = vpack.c.b16 %v1001, %v994
    %v1387 = vpack.c.b16 %v1009, %v1002
    %v1388 = vpack.c.b16 %v1010, %v1003
    %v1389 = vpack.c.b16 %v1011, %v1004
    %v1390 = vpack.c.b16 %v1012, %v1005
    %v1391 = vpack.c.b16 %v1013, %v1006
    %v1392 = vpack.c.b16 %v1014, %v1007
    %v1393 = vpack.c.b16 %v1015, %v1008
    %v1394 = vpack.c.b16 %v1023, %v1016
    %v1395 = vpack.c.b16 %v1024, %v1017
    %v1396 = vpack.c.b16 %v1025, %v1018
    %v1397 = vpack.c.b16 %v1026, %v1019
    %v1398 = vpack.c.b16 %v1027, %v1020
    %v1399 = vpack.c.b16 %v1028, %v1021
    %v1400 = vpack.c.b16 %v1029, %v1022
    %v1401 = vpack.c.b16 %v1037, %v1030
    %v1402 = vpack.c.b16 %v1038, %v1031
    %v1403 = vpack.c.b16 %v1039, %v1032
    %v1404 = vpack.c.b16 %v1040, %v1033
    %v1405 = vpack.c.b16 %v1041, %v1034
    %v1406 = vpack.c.b16 %v1042, %v1035
    %v1407 = vpack.c.b16 %v1043, %v1036
    %v1408 = vpack.c.b16 %v1051, %v1044
    %v1409 = vpack.c.b16 %v1052, %v1045
    %v1410 = vpack.c.b16 %v1053, %v1046
    %v1411 = vpack.c.b16 %v1054, %v1047
    %v1412 = vpack.c.b16 %v1055, %v1048
    %v1413 = vpack.c.b16 %v1056, %v1049
    %v1414 = vpack.c.b16 %v1057, %v1050
    %v1415 = vpack.c.b16 %v1065, %v1058
    %v1416 = vpack.c.b16 %v1066, %v1059
    %v1417 = vpack.c.b16 %v1067, %v1060
    %v1418 = vpack.c.b16 %v1068, %v1061
    %v1419 = vpack.c.b16 %v1069, %v1062
    %v1420 = vpack.c.b16 %v1070, %v1063
    %v1421 = vpack.c.b16 %v1071, %v1064
    %v1422 = vpack.c.b16 %v1079, %v1072
    %v1423 = vpack.c.b16 %v1080, %v1073
    %v1424 = vpack.c.b16 %v1081, %v1074
    %v1425 = vpack.c.b16 %v1082, %v1075
    %v1426 = vpack.c.b16 %v1083, %v1076
    %v1427 = vpack.c.b16 %v1084, %v1077
    %v1428 = vpack.c.b16 %v1085, %v1078
    %v1429 = vpack.c.b16 %v1093, %v1086
    %v1430 = vpack.c.b16 %v1094, %v1087
    %v1431 = vpack.c.b16 %v1095, %v1088
    %v1432 = vpack.c.b16 %v1096, %v1089
    %v1433 = vpack.c.b16 %v1097, %v1090
    %v1434 = vpack.c.b16 %v1098, %v1091
    %v1435 = vpack.c.b16 %v1099, %v1092
    %v1436 = vpack.c.b16 %v1107, %v1100
    %v1437 = vpack.c.b16 %v1108, %v1101
    %v1438 = vpack.c.b16 %v1109, %v1102
    %v1439 = vpack.c.b16 %v1110, %v1103
    %v1440 = vpack.c.b16 %v1111, %v1104
    %v1441 = vpack.c.b16 %v1112, %v1105
    %v1442 = vpack.c.b16 %v1113, %v1106
    %v1443 = vpack.c.b16 %v1121, %v1114
    %v1444 = vpack.c.b16 %v1122, %v1115
    %v1445 = vpack.c.b16 %v1123, %v1116
    %v1446 = vpack.c.b16 %v1124, %v1117
    %v1447 = vpack.c.b16 %v1125, %v1118
    %v1448 = vpack.c.b16 %v1126, %v1119
    %v1449 = vpack.c.b16 %v1127, %v1120
    %v1450 = vpack.c.b16 %v1135, %v1128
    %v1451 = vpack.c.b16 %v1136, %v1129
    %v1452 = vpack.c.b16 %v1137, %v1130
    %v1453 = vpack.c.b16 %v1138, %v1131
    %v1454 = vpack.c.b16 %v1139, %v1132
    %v1455 = vpack.c.b16 %v1140, %v1133
    %v1456 = vpack.c.b16 %v1141, %v1134
    %v1457 = vpack.c.b16 %v1149, %v1142
    %v1458 = vpack.c.b16 %v1150, %v1143
    %v1459 = vpack.c.b16 %v1151, %v1144
    %v1460 = vpack.c.b16 %v1152, %v1145
    %v1461 = vpack.c.b16 %v1153, %v1146
    %v1462 = vpack.c.b16 %v1154, %v1147
    %v1463 = vpack.c.b16 %v1155, %v1148
    %v1464 = vpack.c.b16 %v1163, %v1156
    %v1465 = vpack.c.b16 %v1164, %v1157
    %v1466 = vpack.c.b16 %v1165, %v1158
    %v1467 = vpack.c.b16 %v1166, %v1159
    %v1468 = vpack.c.b16 %v1167, %v1160
    %v1469 = vpack.c.b16 %v1168, %v1161
    %v1470 = vpack.c.b16 %v1169, %v1162
    %v1471 = vpack.c.b16 %v1177, %v1170
    %v1472 = vpack.c.b16 %v1178, %v1171
    %v1473 = vpack.c.b16 %v1179, %v1172
    %v1474 = vpack.c.b16 %v1180, %v1173
    %v1475 = vpack.c.b16 %v1181, %v1174
    %v1476 = vpack.c.b16 %v1182, %v1175
    %v1477 = vpack.c.b16 %v1183, %v1176
    %v1478 = vpack.c.b16 %v1191, %v1184
    %v1479 = vpack.c.b16 %v1192, %v1185
    %v1480 = vpack.c.b16 %v1193, %v1186
    %v1481 = vpack.c.b16 %v1194, %v1187
    %v1482 = vpack.c.b16 %v1195, %v1188
    %v1483 = vpack.c.b16 %v1196, %v1189
    %v1484 = vpack.c.b16 %v1197, %v1190
    %v1485 = vpack.c.b16 %v1205, %v1198
    %v1486 = vpack.c.b16 %v1206, %v1199
    %v1487 = vpack.c.b16 %v1207, %v1200
    %v1488 = vpack.c.b16 %v1208, %v1201
    %v1489 = vpack.c.b16 %v1209, %v1202
    %v1490 = vpack.c.b16 %v1210, %v1203
    %v1491 = vpack.c.b16 %v1211, %v1204
    %v1492 = vpack.c.b16 %v1219, %v1212
    %v1493 = vpack.c.b16 %v1220, %v1213
    %v1494 = vpack.c.b16 %v1221, %v1214
    %v1495 = vpack.c.b16 %v1222, %v1215
    %v1496 = vpack.c.b16 %v1223, %v1216
    %v1497 = vpack.c.b16 %v1224, %v1217
    %v1498 = vpack.c.b16 %v1225, %v1218
    %v1499 = vpack.c.b16 %v1233, %v1226
    %v1500 = vpack.c.b16 %v1234, %v1227
    %v1501 = vpack.c.b16 %v1235, %v1228
    %v1502 = vpack.c.b16 %v1236, %v1229
    %v1503 = vpack.c.b16 %v1237, %v1230
    %v1504 = vpack.c.b16 %v1238, %v1231
    %v1505 = vpack.c.b16 %v1239, %v1232
    %v1506 = vpack.c.b16 %v1247, %v1240
    %v1507 = vpack.c.b16 %v1248, %v1241
    %v1508 = vpack.c.b16 %v1249, %v1242
    %v1509 = vpack.c.b16 %v1250, %v1243
    %v1510 = vpack.c.b16 %v1251, %v1244
    %v1511 = vpack.c.b16 %v1252, %v1245
    %v1512 = vpack.c.b16 %v1253, %v1246
    %v1513 = vpack.c.b16 %v1261, %v1254
    %v1514 = vpack.c.b16 %v1262, %v1255
    %v1515 = vpack.c.b16 %v1263, %v1256
    %v1516 = vpack.c.b16 %v1264, %v1257
    %v1517 = vpack.c.b16 %v1265, %v1258
    %v1518 = vpack.c.b16 %v1266, %v1259
    %v1519 = vpack.c.b16 %v1267, %v1260
    %v1520 = vpack.c.b16 %v1275, %v1268
    %v1521 = vpack.c.b16 %v1276, %v1269
    %v1522 = vpack.c.b16 %v1277, %v1270
    %v1523 = vpack.c.b16 %v1278, %v1271
    %v1524 = vpack.c.b16 %v1279, %v1272
    %v1525 = vpack.c.b16 %v1280, %v1273
    %v1526 = vpack.c.b16 %v1281, %v1274
    %v1527 = vpack.c.b16 %v1289, %v1282
    %v1528 = vpack.c.b16 %v1290, %v1283
    %v1529 = vpack.c.b16 %v1291, %v1284
    %v1530 = vpack.c.b16 %v1292, %v1285
    %v1531 = vpack.c.b16 %v1293, %v1286
    %v1532 = vpack.c.b16 %v1294, %v1287
    %v1533 = vpack.c.b16 %v1295, %v1288
    %v1534 = vpack.c.b16 %v1303, %v1296
    %v1535 = vpack.c.b16 %v1304, %v1297
    %v1536 = vpack.c.b16 %v1305, %v1298
    %v1537 = vpack.c.b16 %v1306, %v1299
    %v1538 = vpack.c.b16 %v1307, %v1300
    %v1539 = vpack.c.b16 %v1308, %v1301
    %v1540 = vpack.c.b16 %v1309, %v1302
    %v1541 = vpack.c.b16 %v1317, %v1310
    %v1542 = vpack.c.b16 %v1318, %v1311
    %v1543 = vpack.c.b16 %v1319, %v1312
    %v1544 = vpack.c.b16 %v1320, %v1313
    %v1545 = vpack.c.b16 %v1321, %v1314
    %v1546 = vpack.c.b16 %v1322, %v1315
    %v1547 = vpack.c.b16 %v1323, %v1316
    %1772 = vmatprep.subr.bf16.mxu0 %v1325
    %1773 = vmatpush1.bf16.msra.mxu0 %v1324
    %1774 = vmatprep.subr.bf16.mxu0 %v1332
    %1775 = vmatpush1.bf16.msra.mxu0 %v1331
    %1776 = vmatprep.subr.bf16.mxu0 %v1339
    %1777 = vmatpush1.bf16.msra.mxu0 %v1338
    %1778 = vmatprep.subr.bf16.mxu0 %v1346
    %1779 = vmatpush1.bf16.msra.mxu0 %v1345
    %1780 = vmatprep.subr.bf16.mxu0 %v1353
    %1781 = vmatpush1.bf16.msra.mxu0 %v1352
    %1782 = vmatprep.subr.bf16.mxu0 %v1360
    %1783 = vmatpush1.bf16.msra.mxu0 %v1359
    %1784 = vmatprep.subr.bf16.mxu0 %v1367
    %1785 = vmatpush1.bf16.msra.mxu0 %v1366
    %1786 = vmatprep.subr.bf16.mxu0 %v1374
    %1787 = vmatpush1.bf16.msra.mxu0 %v1373
    %1788 = vmatprep.subr.bf16.mxu0 %v1381
    %1789 = vmatpush1.bf16.msra.mxu0 %v1380
    %1790 = vmatprep.subr.bf16.mxu0 %v1388
    %1791 = vmatpush1.bf16.msra.mxu0 %v1387
    %1792 = vmatprep.subr.bf16.mxu0 %v1395
    %1793 = vmatpush1.bf16.msra.mxu0 %v1394
    %1794 = vmatprep.subr.bf16.mxu0 %v1402
    %1795 = vmatpush1.bf16.msra.mxu0 %v1401
    %1796 = vmatprep.subr.bf16.mxu0 %v1409
    %1797 = vmatpush1.bf16.msra.mxu0 %v1408
    %1798 = vmatprep.subr.bf16.mxu0 %v1416
    %1799 = vmatpush1.bf16.msra.mxu0 %v1415
    %1800 = vmatprep.subr.bf16.mxu0 %v1423
    %1801 = vmatpush1.bf16.msra.mxu0 %v1422
    %1802 = vmatprep.subr.bf16.mxu0 %v1430
    %1803 = vmatpush1.bf16.msra.mxu0 %v1429
    %1804 = vmatprep.mubr.bf16.mxu0 %v324
    %1805 = vmatmul.mubr.bf16.gmra.mrb[0].mxu0 %v323
    %v1806 = vpop.f32.mrb[0].mxu0
    %v1807 = vadd.f32 %v588, %v1806
    %v1808 = vpop.f32.mrb[0].mxu0
    %v1809 = vadd.f32 %v592, %v1808
    %v1810 = vpop.f32.mrb[0].mxu0
    %v1811 = vpop.f32.mrb[0].mxu0
    %1812 = vdwg.mxu0
    %1813 = vmatprep.subr.bf16.mxu0 %v1437
    %1814 = vmatpush1.bf16.msra.mxu0 %v1436
    %1815 = vmatprep.subr.bf16.mxu0 %v1444
    %1816 = vmatpush1.bf16.msra.mxu0 %v1443
    %1817 = vmatprep.subr.bf16.mxu0 %v1451
    %1818 = vmatpush1.bf16.msra.mxu0 %v1450
    %1819 = vmatprep.subr.bf16.mxu0 %v1458
    %1820 = vmatpush1.bf16.msra.mxu0 %v1457
    %1821 = vmatprep.subr.bf16.mxu0 %v1465
    %1822 = vmatpush1.bf16.msra.mxu0 %v1464
    %1823 = vmatprep.subr.bf16.mxu0 %v1472
    %1824 = vmatpush1.bf16.msra.mxu0 %v1471
    %1825 = vmatprep.subr.bf16.mxu0 %v1479
    %1826 = vmatpush1.bf16.msra.mxu0 %v1478
    %1827 = vmatprep.subr.bf16.mxu0 %v1486
    %1828 = vmatpush1.bf16.msra.mxu0 %v1485
    %1829 = vmatprep.subr.bf16.mxu0 %v1493
    %1830 = vmatpush1.bf16.msra.mxu0 %v1492
    %1831 = vmatprep.subr.bf16.mxu0 %v1500
    %1832 = vmatpush1.bf16.msra.mxu0 %v1499
    %1833 = vmatprep.subr.bf16.mxu0 %v1507
    %1834 = vmatpush1.bf16.msra.mxu0 %v1506
    %1835 = vmatprep.subr.bf16.mxu0 %v1514
    %1836 = vmatpush1.bf16.msra.mxu0 %v1513
    %1837 = vmatprep.subr.bf16.mxu0 %v1521
    %1838 = vmatpush1.bf16.msra.mxu0 %v1520
    %1839 = vmatprep.subr.bf16.mxu0 %v1528
    %1840 = vmatpush1.bf16.msra.mxu0 %v1527
    %1841 = vmatprep.subr.bf16.mxu0 %v1535
    %1842 = vmatpush1.bf16.msra.mxu0 %v1534
    %1843 = vmatprep.subr.bf16.mxu0 %v1542
    %1844 = vmatpush1.bf16.msra.mxu0 %v1541
    %1845 = vmatprep.mubr.bf16.mxu0 %v326
    %1846 = vmatmul.mubr.bf16.gmra.mrb[0].mxu0 %v325
    %v1847 = vpop.f32.mrb[0].mxu0
    %v1848 = vadd.f32 %v1807, %v1847
    %v1849 = vpop.f32.mrb[0].mxu0
    %v1850 = vadd.f32 %v1809, %v1849
    %v1851 = vpop.f32.mrb[0].mxu0
    %v1852 = vpop.f32.mrb[0].mxu0
    %1853 = vdwg.mxu0
    %1854 = vmatprep.subr.bf16.mxu0 %v1327
    %1855 = vmatpush1.bf16.msra.mxu0 %v1326
    %1856 = vmatprep.subr.bf16.mxu0 %v1334
    %1857 = vmatpush1.bf16.msra.mxu0 %v1333
    %1858 = vmatprep.subr.bf16.mxu0 %v1341
    %1859 = vmatpush1.bf16.msra.mxu0 %v1340
    %1860 = vmatprep.subr.bf16.mxu0 %v1348
    %1861 = vmatpush1.bf16.msra.mxu0 %v1347
    %1862 = vmatprep.subr.bf16.mxu0 %v1355
    %1863 = vmatpush1.bf16.msra.mxu0 %v1354
    %1864 = vmatprep.subr.bf16.mxu0 %v1362
    %1865 = vmatpush1.bf16.msra.mxu0 %v1361
    %1866 = vmatprep.subr.bf16.mxu0 %v1369
    %1867 = vmatpush1.bf16.msra.mxu0 %v1368
    %1868 = vmatprep.subr.bf16.mxu0 %v1376
    %1869 = vmatpush1.bf16.msra.mxu0 %v1375
    %1870 = vmatprep.subr.bf16.mxu0 %v1383
    %1871 = vmatpush1.bf16.msra.mxu0 %v1382
    %1872 = vmatprep.subr.bf16.mxu0 %v1390
    %1873 = vmatpush1.bf16.msra.mxu0 %v1389
    %1874 = vmatprep.subr.bf16.mxu0 %v1397
    %1875 = vmatpush1.bf16.msra.mxu0 %v1396
    %1876 = vmatprep.subr.bf16.mxu0 %v1404
    %1877 = vmatpush1.bf16.msra.mxu0 %v1403
    %1878 = vmatprep.subr.bf16.mxu0 %v1411
    %1879 = vmatpush1.bf16.msra.mxu0 %v1410
    %1880 = vmatprep.subr.bf16.mxu0 %v1418
    %1881 = vmatpush1.bf16.msra.mxu0 %v1417
    %1882 = vmatprep.subr.bf16.mxu0 %v1425
    %1883 = vmatpush1.bf16.msra.mxu0 %v1424
    %1884 = vmatprep.subr.bf16.mxu0 %v1432
    %1885 = vmatpush1.bf16.msra.mxu0 %v1431
    %1886 = vmatprep.mubr.bf16.mxu0 %v324
    %1887 = vmatmul.mubr.bf16.gmra.mrb[0].mxu0 %v323
    %v1888 = vpop.f32.mrb[0].mxu0
    %v1889 = vadd.f32 %v596, %v1888
    %v1890 = vpop.f32.mrb[0].mxu0
    %v1891 = vadd.f32 %v600, %v1890
    %v1892 = vpop.f32.mrb[0].mxu0
    %v1893 = vpop.f32.mrb[0].mxu0
    %1894 = vdwg.mxu0
    %1895 = vmatprep.subr.bf16.mxu0 %v1439
    %1896 = vmatpush1.bf16.msra.mxu0 %v1438
    %1897 = vmatprep.subr.bf16.mxu0 %v1446
    %1898 = vmatpush1.bf16.msra.mxu0 %v1445
    %1899 = vmatprep.subr.bf16.mxu0 %v1453
    %1900 = vmatpush1.bf16.msra.mxu0 %v1452
    %1901 = vmatprep.subr.bf16.mxu0 %v1460
    %1902 = vmatpush1.bf16.msra.mxu0 %v1459
    %1903 = vmatprep.subr.bf16.mxu0 %v1467
    %1904 = vmatpush1.bf16.msra.mxu0 %v1466
    %1905 = vmatprep.subr.bf16.mxu0 %v1474
    %1906 = vmatpush1.bf16.msra.mxu0 %v1473
    %1907 = vmatprep.subr.bf16.mxu0 %v1481
    %1908 = vmatpush1.bf16.msra.mxu0 %v1480
    %1909 = vmatprep.subr.bf16.mxu0 %v1488
    %1910 = vmatpush1.bf16.msra.mxu0 %v1487
    %1911 = vmatprep.subr.bf16.mxu0 %v1495
    %1912 = vmatpush1.bf16.msra.mxu0 %v1494
    %1913 = vmatprep.subr.bf16.mxu0 %v1502
    %1914 = vmatpush1.bf16.msra.mxu0 %v1501
    %1915 = vmatprep.subr.bf16.mxu0 %v1509
    %1916 = vmatpush1.bf16.msra.mxu0 %v1508
    %1917 = vmatprep.subr.bf16.mxu0 %v1516
    %1918 = vmatpush1.bf16.msra.mxu0 %v1515
    %1919 = vmatprep.subr.bf16.mxu0 %v1523
    %1920 = vmatpush1.bf16.msra.mxu0 %v1522
    %1921 = vmatprep.subr.bf16.mxu0 %v1530
    %1922 = vmatpush1.bf16.msra.mxu0 %v1529
    %1923 = vmatprep.subr.bf16.mxu0 %v1537
    %1924 = vmatpush1.bf16.msra.mxu0 %v1536
    %1925 = vmatprep.subr.bf16.mxu0 %v1544
    %1926 = vmatpush1.bf16.msra.mxu0 %v1543
    %1927 = vmatprep.mubr.bf16.mxu0 %v326
    %1928 = vmatmul.mubr.bf16.gmra.mrb[0].mxu0 %v325
    %v1929 = vpop.f32.mrb[0].mxu0
    %v1930 = vadd.f32 %v1889, %v1929
    %v1931 = vpop.f32.mrb[0].mxu0
    %v1932 = vadd.f32 %v1891, %v1931
    %v1933 = vpop.f32.mrb[0].mxu0
    %v1934 = vpop.f32.mrb[0].mxu0
    %1935 = vdwg.mxu0
    %1936 = vmatprep.subr.bf16.mxu0 %v1329
    %1937 = vmatpush1.bf16.msra.mxu0 %v1328
    %1938 = vmatprep.subr.bf16.mxu0 %v1336
    %1939 = vmatpush1.bf16.msra.mxu0 %v1335
    %1940 = vmatprep.subr.bf16.mxu0 %v1343
    %1941 = vmatpush1.bf16.msra.mxu0 %v1342
    %1942 = vmatprep.subr.bf16.mxu0 %v1350
    %1943 = vmatpush1.bf16.msra.mxu0 %v1349
    %1944 = vmatprep.subr.bf16.mxu0 %v1357
    %1945 = vmatpush1.bf16.msra.mxu0 %v1356
    %1946 = vmatprep.subr.bf16.mxu0 %v1364
    %1947 = vmatpush1.bf16.msra.mxu0 %v1363
    %1948 = vmatprep.subr.bf16.mxu0 %v1371
    %1949 = vmatpush1.bf16.msra.mxu0 %v1370
    %1950 = vmatprep.subr.bf16.mxu0 %v1378
    %1951 = vmatpush1.bf16.msra.mxu0 %v1377
    %1952 = vmatprep.subr.bf16.mxu0 %v1385
    %1953 = vmatpush1.bf16.msra.mxu0 %v1384
    %1954 = vmatprep.subr.bf16.mxu0 %v1392
    %1955 = vmatpush1.bf16.msra.mxu0 %v1391
    %1956 = vmatprep.subr.bf16.mxu0 %v1399
    %1957 = vmatpush1.bf16.msra.mxu0 %v1398
    %1958 = vmatprep.subr.bf16.mxu0 %v1406
    %1959 = vmatpush1.bf16.msra.mxu0 %v1405
    %1960 = vmatprep.subr.bf16.mxu0 %v1413
    %1961 = vmatpush1.bf16.msra.mxu0 %v1412
    %1962 = vmatprep.subr.bf16.mxu0 %v1420
    %1963 = vmatpush1.bf16.msra.mxu0 %v1419
    %1964 = vmatprep.subr.bf16.mxu0 %v1427
    %1965 = vmatpush1.bf16.msra.mxu0 %v1426
    %1966 = vmatprep.subr.bf16.mxu0 %v1434
    %1967 = vmatpush1.bf16.msra.mxu0 %v1433
    %1968 = vmatprep.mubr.bf16.mxu0 %v324
    %1969 = vmatmul.mubr.bf16.gmra.mrb[0].mxu0 %v323
    %v1970 = vpop.f32.mrb[0].mxu0
    %v1971 = vadd.f32 %v604, %v1970
    %v1972 = vpop.f32.mrb[0].mxu0
    %v1973 = vadd.f32 %v608, %v1972
    %v1974 = vpop.f32.mrb[0].mxu0
    %v1975 = vpop.f32.mrb[0].mxu0
    %1976 = vdwg.mxu0
    %1977 = vmatprep.subr.bf16.mxu0 %v1441
    %1978 = vmatpush1.bf16.msra.mxu0 %v1440
    %1979 = vmatprep.subr.bf16.mxu0 %v1448
    %1980 = vmatpush1.bf16.msra.mxu0 %v1447
    %1981 = vmatprep.subr.bf16.mxu0 %v1455
    %1982 = vmatpush1.bf16.msra.mxu0 %v1454
    %1983 = vmatprep.subr.bf16.mxu0 %v1462
    %1984 = vmatpush1.bf16.msra.mxu0 %v1461
    %1985 = vmatprep.subr.bf16.mxu0 %v1469
    %1986 = vmatpush1.bf16.msra.mxu0 %v1468
    %1987 = vmatprep.subr.bf16.mxu0 %v1476
    %1988 = vmatpush1.bf16.msra.mxu0 %v1475
    %1989 = vmatprep.subr.bf16.mxu0 %v1483
    %1990 = vmatpush1.bf16.msra.mxu0 %v1482
    %1991 = vmatprep.subr.bf16.mxu0 %v1490
    %1992 = vmatpush1.bf16.msra.mxu0 %v1489
    %1993 = vmatprep.subr.bf16.mxu0 %v1497
    %1994 = vmatpush1.bf16.msra.mxu0 %v1496
    %1995 = vmatprep.subr.bf16.mxu0 %v1504
    %1996 = vmatpush1.bf16.msra.mxu0 %v1503
    %1997 = vmatprep.subr.bf16.mxu0 %v1511
    %1998 = vmatpush1.bf16.msra.mxu0 %v1510
    %1999 = vmatprep.subr.bf16.mxu0 %v1518
    %2000 = vmatpush1.bf16.msra.mxu0 %v1517
    %2001 = vmatprep.subr.bf16.mxu0 %v1525
    %2002 = vmatpush1.bf16.msra.mxu0 %v1524
    %2003 = vmatprep.subr.bf16.mxu0 %v1532
    %2004 = vmatpush1.bf16.msra.mxu0 %v1531
    %2005 = vmatprep.subr.bf16.mxu0 %v1539
    %2006 = vmatpush1.bf16.msra.mxu0 %v1538
    %2007 = vmatprep.subr.bf16.mxu0 %v1546
    %2008 = vmatpush1.bf16.msra.mxu0 %v1545
    %2009 = vmatprep.mubr.bf16.mxu0 %v326
    %2010 = vmatmul.mubr.bf16.gmra.mrb[0].mxu0 %v325
    %v2011 = vpop.f32.mrb[0].mxu0
    %v2012 = vadd.f32 %v1971, %v2011
    %v2013 = vpop.f32.mrb[0].mxu0
    %v2014 = vadd.f32 %v1973, %v2013
    %v2015 = vpop.f32.mrb[0].mxu0
    %v2016 = vpop.f32.mrb[0].mxu0
    %2017 = vdwg.mxu0
    %2018 = vmatprep.subr.bf16.mxu0 0
    %2019 = vmatpush1.bf16.msra.mxu0 %v1330
    %2020 = vmatprep.subr.bf16.mxu0 0
    %2021 = vmatpush1.bf16.msra.mxu0 %v1337
    %2022 = vmatprep.subr.bf16.mxu0 0
    %2023 = vmatpush1.bf16.msra.mxu0 %v1344
    %2024 = vmatprep.subr.bf16.mxu0 0
    %2025 = vmatpush1.bf16.msra.mxu0 %v1351
    %2026 = vmatprep.subr.bf16.mxu0 0
    %2027 = vmatpush1.bf16.msra.mxu0 %v1358
    %2028 = vmatprep.subr.bf16.mxu0 0
    %2029 = vmatpush1.bf16.msra.mxu0 %v1365
    %2030 = vmatprep.subr.bf16.mxu0 0
    %2031 = vmatpush1.bf16.msra.mxu0 %v1372
    %2032 = vmatprep.subr.bf16.mxu0 0
    %2033 = vmatpush1.bf16.msra.mxu0 %v1379
    %2034 = vmatprep.subr.bf16.mxu0 0
    %2035 = vmatpush1.bf16.msra.mxu0 %v1386
    %2036 = vmatprep.subr.bf16.mxu0 0
    %2037 = vmatpush1.bf16.msra.mxu0 %v1393
    %2038 = vmatprep.subr.bf16.mxu0 0
    %2039 = vmatpush1.bf16.msra.mxu0 %v1400
    %2040 = vmatprep.subr.bf16.mxu0 0
    %2041 = vmatpush1.bf16.msra.mxu0 %v1407
    %2042 = vmatprep.subr.bf16.mxu0 0
    %2043 = vmatpush1.bf16.msra.mxu0 %v1414
    %2044 = vmatprep.subr.bf16.mxu0 0
    %2045 = vmatpush1.bf16.msra.mxu0 %v1421
    %2046 = vmatprep.subr.bf16.mxu0 0
    %2047 = vmatpush1.bf16.msra.mxu0 %v1428
    %2048 = vmatprep.subr.bf16.mxu0 0
    %2049 = vmatpush1.bf16.msra.mxu0 %v1435
    %2050 = vmatprep.mubr.bf16.mxu0 %v324
    %2051 = vmatmul.mubr.bf16.gmra.mrb[0].mxu0 %v323
    %v2052 = vpop.f32.mrb[0].mxu0
    %v2053 = vadd.f32 %v612, %v2052
    %v2054 = vpop.f32.mrb[0].mxu0
    %v2055 = vpop.f32.mrb[0].mxu0
    %v2056 = vpop.f32.mrb[0].mxu0
    %2057 = vdwg.mxu0
    %2058 = vmatprep.subr.bf16.mxu0 0
    %2059 = vmatpush1.bf16.msra.mxu0 %v1442
    %2060 = vmatprep.subr.bf16.mxu0 0
    %2061 = vmatpush1.bf16.msra.mxu0 %v1449
    %2062 = vmatprep.subr.bf16.mxu0 0
    %2063 = vmatpush1.bf16.msra.mxu0 %v1456
    %2064 = vmatprep.subr.bf16.mxu0 0
    %2065 = vmatpush1.bf16.msra.mxu0 %v1463
    %2066 = vmatprep.subr.bf16.mxu0 0
    %2067 = vmatpush1.bf16.msra.mxu0 %v1470
    %2068 = vmatprep.subr.bf16.mxu0 0
    %2069 = vmatpush1.bf16.msra.mxu0 %v1477
    %2070 = vmatprep.subr.bf16.mxu0 0
    %2071 = vmatpush1.bf16.msra.mxu0 %v1484
    %2072 = vmatprep.subr.bf16.mxu0 0
    %2073 = vmatpush1.bf16.msra.mxu0 %v1491
    %2074 = vmatprep.subr.bf16.mxu0 0
    %2075 = vmatpush1.bf16.msra.mxu0 %v1498
    %2076 = vmatprep.subr.bf16.mxu0 0
    %2077 = vmatpush1.bf16.msra.mxu0 %v1505
    %2078 = vmatprep.subr.bf16.mxu0 0
    %2079 = vmatpush1.bf16.msra.mxu0 %v1512
    %2080 = vmatprep.subr.bf16.mxu0 0
    %2081 = vmatpush1.bf16.msra.mxu0 %v1519
    %2082 = vmatprep.subr.bf16.mxu0 0
    %2083 = vmatpush1.bf16.msra.mxu0 %v1526
    %2084 = vmatprep.subr.bf16.mxu0 0
    %2085 = vmatpush1.bf16.msra.mxu0 %v1533
    %2086 = vmatprep.subr.bf16.mxu0 0
    %2087 = vmatpush1.bf16.msra.mxu0 %v1540
    %2088 = vmatprep.subr.bf16.mxu0 0
    %2089 = vmatpush1.bf16.msra.mxu0 %v1547
    %2090 = vmatprep.mubr.bf16.mxu0 %v326
    %2091 = vmatmul.mubr.bf16.gmra.mrb[0].mxu0 %v325
    %v2092 = vpop.f32.mrb[0].mxu0
    %v2093 = vadd.f32 %v2053, %v2092
    %v2094 = vpop.f32.mrb[0].mxu0
    %v2095 = vpop.f32.mrb[0].mxu0
    %v2096 = vpop.f32.mrb[0].mxu0
    %2097 = vdwg.mxu0
    %v2098 = vsub.f32 0.0, %v1848
    %v2099 = vsub.f32 0.0, %v1850
    %v2100 = vsub.f32 0.0, %v1930
    %v2101 = vsub.f32 0.0, %v1932
    %v2102 = vsub.f32 0.0, %v2012
    %v2103 = vsub.f32 0.0, %v2014
    %v2104 = vsub.f32 0.0, %v2093
    %v2105 = vmul.f32 %v2098, 1.442695
    %v2106 = vpow.pop %v2105
    %v2107 = vmul.f32 %v2099, 1.442695
    %v2108 = vpow.pop %v2107
    %v2109 = vmul.f32 %v2100, 1.442695
    %v2110 = vpow.pop %v2109
    %v2111 = vmul.f32 %v2101, 1.442695
    %v2112 = vpow.pop %v2111
    %v2113 = vmul.f32 %v2102, 1.442695
    %v2114 = vpow.pop %v2113
    %v2115 = vmul.f32 %v2103, 1.442695
    %v2116 = vpow.pop %v2115
    %v2117 = vmul.f32 %v2104, 1.442695
    %v2118 = vpow.pop %v2117
    %v2119 = vadd.f32 %v2106, 1.0
    %v2120 = vadd.f32 %v2108, 1.0
    %v2121 = vadd.f32 %v2110, 1.0
    %v2122 = vadd.f32 %v2112, 1.0
    %v2123 = vadd.f32 %v2114, 1.0
    %v2124 = vadd.f32 %v2116, 1.0
    %v2125 = vadd.f32 %v2118, 1.0
    %v2126 = vrcp.pop %v2119
    %v2127 = vrcp.pop %v2120
    %v2128 = vrcp.pop %v2121
    %v2129 = vrcp.pop %v2122
    %v2130 = vrcp.pop %v2123
    %v2131 = vrcp.pop %v2124
    %v2132 = vrcp.pop %v2125
    %2133 = vst [vmem:[#allocation2] sm:$0xff] %v2126
    %2134 = vst [vmem:[#allocation2 + $0x8] sm:$0xff] %v2127
    %2135 = vst [vmem:[#allocation2 + $0x10] sm:$0xff] %v2128
    %2136 = vst [vmem:[#allocation2 + $0x18] sm:$0xff] %v2129
    %2137 = vst [vmem:[#allocation2 + $0x20] sm:$0xff] %v2130
    %2138 = vst [vmem:[#allocation2 + $0x28] sm:$0xff] %v2131
    %vm2139 = vcmask 130048
    %2140 = vst.msk [vmem:[#allocation2 + $0x30] sm:$0xff] %vm2139, %v2132
    // Predicated region
    $region22: #{decoder_forward.1} parent=1 // pred_check
      _
    $region23: #{decoder_forward.1} parent=1 // pred_check_branch
      %2142 = sbr.rel (0) target = $region25
    $region24: #{decoder_forward.1} parent=1 // pred_region
      %s2144 = ssub.s32 896, 896
      %2145 = vsyncadd [#allocation3], %s2144
      %s2147 = sshll.u32 [#allocation2], 4
      %s2148 = int_to_ptr.vmem [resolvable:$true] %s2147
      %2150 = dma.vmem_to_hbm [thread:$0]  %s2148, 896, %s5, [#allocation3]
    $region25: #{decoder_forward.1} parent=1 // pred_fallthru
      _
    // Predicated region
    $region26: #{decoder_forward.1} parent=1 // pred_check
      _
    $region27: #{decoder_forward.1} parent=1 // pred_check_branch
      %2152 = sbr.rel (0) target = $region29
    $region28: #{decoder_forward.1} parent=1 // pred_region
      %2153 = dma.done [#allocation3], 896
    $region29: #{decoder_forward.1} parent=1 // pred_fallthru
      _
    %2154 = vsyncpa [#allocation3], 1

</llo_original>
